<compile_context>
chip_gen: v5e
topology: v5e:2x2
jax: 0.10.0
libtpu: 0.0.40
codegen_flags: <defaults>
</compile_context>

<pallas_src>
import functools

import jax
import jax.numpy as jnp
from jax import lax
from jax.experimental import pallas as pl
from jax.experimental.pallas import tpu as pltpu

_LANES = 128
_SUBLANES = 8
_NUM_SPLITS = 2   # leading "parallel" grid axis; uses both TensorCores on v7x.


def _round_up(x, m):
    return ((x + m - 1) // m) * m


def _yolo_loss_kernel(pred_ref, tbox_ref, tcls_ref, mask_ref, out_ref,
                      *, S, B, n_sub):
    """One grid step = (channels, tile_rows, 128) tile of flattened grid cells.

    out_ref: (1, 4, 8, 128) resident accumulator block (one per parallel split)
      component 0: class loss           (unscaled)
      component 1: no-object conf loss  (unscaled; * l_noobj in wrapper)
      component 2: containing-conf loss
      component 3: regression loss      (unscaled; * l_coord in wrapper)
    """
    inv_S = jnp.float32(1.0 / S)
    half = jnp.float32(0.5)
    n_cls = 20

    @pl.when(pl.program_id(1) == 0)
    def _init():
        out_ref[...] = jnp.zeros_like(out_ref)

    def body(j, carry):
        cls_a, noo_a, con_a, reg_a = carry
        r0 = pl.multiple_of(j * _SUBLANES, _SUBLANES)
        rows = pl.ds(r0, _SUBLANES)

        obj = mask_ref[0, rows, :]                     # (8, 128)
        noobj = 1.0 - obj

        # ---------------- class prediction loss ----------------
        csum = jnp.zeros((_SUBLANES, _LANES), jnp.float32)
        for k in range(n_cls):
            d = pred_ref[B * 5 + k, rows, :] - tcls_ref[k, rows, :]
            csum = csum + d * d
        cls_a = cls_a + obj * csum

        # ---------------- target box corners / area ----------------
        t_x = tbox_ref[0, rows, :]
        t_y = tbox_ref[1, rows, :]
        t_w = tbox_ref[2, rows, :]
        t_h = tbox_ref[3, rows, :]
        tcx = t_x * inv_S
        tcy = t_y * inv_S
        tx1 = tcx - t_w * half
        tx2 = tcx + t_w * half
        ty1 = tcy - t_h * half
        ty2 = tcy + t_h * half
        t_area = t_w * t_h

        # -------- per-predictor: no-object conf^2; best box by diag IoU --------
        noobj_sum = jnp.zeros((_SUBLANES, _LANES), jnp.float32)
        b_x = b_y = b_w = b_h = b_c = None
        bi = bd = None                                 # incumbent inter / denom
        for b in range(B):
            o = b * 5
            p_x = pred_ref[o + 0, rows, :]
            p_y = pred_ref[o + 1, rows, :]
            p_w = pred_ref[o + 2, rows, :]
            p_h = pred_ref[o + 3, rows, :]
            p_c = pred_ref[o + 4, rows, :]
            noobj_sum = noobj_sum + p_c * p_c

            pcx = p_x * inv_S
            pcy = p_y * inv_S
            px1 = pcx - p_w * half
            px2 = pcx + p_w * half
            py1 = pcy - p_h * half
            py2 = pcy + p_h * half
            p_area = p_w * p_h

            iw = jnp.maximum(jnp.minimum(px2, tx2) - jnp.maximum(px1, tx1), 0.0)
            ih = jnp.maximum(jnp.minimum(py2, ty2) - jnp.maximum(py1, ty1), 0.0)
            inter = iw * ih
            denom = p_area + t_area - inter

            if b == 0:
                bi, bd = inter, denom
                b_x, b_y, b_w, b_h, b_c = p_x, p_y, p_w, p_h, p_c
            else:
                # Cross-multiplied IoU compare (no divide): for positive denoms
                # inter/denom > bi/bd  <=>  inter*bd > bi*denom.
                # Strict '>' keeps the earlier predictor on ties (torch.argmax).
                better = inter * bd > bi * denom
                bi = jnp.where(better, inter, bi)
                bd = jnp.where(better, denom, bd)
                b_x = jnp.where(better, p_x, b_x)
                b_y = jnp.where(better, p_y, b_y)
                b_w = jnp.where(better, p_w, b_w)
                b_h = jnp.where(better, p_h, b_h)
                b_c = jnp.where(better, p_c, b_c)

        noo_a = noo_a + noobj * noobj_sum

        # Single guarded exact divide for the winning box's IoU.  Padded /
        # degenerate cells (denom <= 0) get iou = 0 instead of NaN; those
        # cells always have obj == 0 for real inputs.
        pos = bd > 0.0
        best_iou = jnp.where(pos, bi, 0.0) / jnp.where(pos, bd, 1.0)

        # containing-object confidence loss (obj * X; X always finite here)
        dc = b_c - best_iou
        con_a = con_a + obj * (dc * dc)

        # regression loss (keep the where: sqrt of a negative predicted w/h in
        # a no-object cell must not leak NaN through the mask)
        d_xy = (b_x - t_x) ** 2 + (b_y - t_y) ** 2
        d_wh = ((jnp.sqrt(b_w) - jnp.sqrt(t_w)) ** 2
                + (jnp.sqrt(b_h) - jnp.sqrt(t_h)) ** 2)
        reg_a = reg_a + jnp.where(obj > 0.0, d_xy + d_wh, 0.0)
        return cls_a, noo_a, con_a, reg_a

    zero = jnp.zeros((_SUBLANES, _LANES), jnp.float32)
    cls_a, noo_a, con_a, reg_a = lax.fori_loop(
        0, n_sub, body, (zero, zero, zero, zero), unroll=True)

    # Fold this step's partials into the resident output block: four dense
    # full-vreg adds on disjoint (8,128) tiles.
    out_ref[0, 0] = out_ref[0, 0] + cls_a
    out_ref[0, 1] = out_ref[0, 1] + noo_a
    out_ref[0, 2] = out_ref[0, 2] + con_a
    out_ref[0, 3] = out_ref[0, 3] + reg_a


def yolo_loss(pred_tensor, target_boxes, target_cls, has_object_map,
              *, S, B, l_coord, l_noobj, tile_rows=64):
    """Pallas implementation of YoloLoss.forward. Returns the same loss dict."""
    N = pred_tensor.shape[0]
    C = B * 5 + 20
    M = N * S * S

    rows_needed = -(-M // _LANES)                              # ceil(M / 128)
    tile_rows = min(tile_rows, _round_up(rows_needed, _SUBLANES))
    tile_rows = _round_up(tile_rows, _SUBLANES)                # multiple of 8
    blocks = _round_up(-(-rows_needed // tile_rows), _NUM_SPLITS)
    steps = blocks // _NUM_SPLITS                              # steps per split
    R = blocks * tile_rows                                     # total 128-lane rows
    Mp = R * _LANES
    pad = Mp - M

    # TODO(synk): produce this channel-major (C, rows, 128) layout upstream
    # (fused into the model head) so the transpose/pad below doesn't cost an
    # extra HBM pass; if upstream activations are bf16, keep them bf16 here and
    # cast after the load inside the kernel to halve HBM bytes.
    def prep(x, c):
        x = x.reshape(M, c)
        if x.dtype != jnp.float32:
            x = x.astype(jnp.float32)
        x = jnp.pad(x, ((0, pad), (0, 0)))                     # zero padding
        return jnp.transpose(x.reshape(R, _LANES, c), (2, 0, 1))  # (c, R, 128)

    pred = prep(pred_tensor, C)         # (30, R, 128)
    tbox = prep(target_boxes, 4)        # (4,  R, 128)
    tcls = prep(target_cls, 20)         # (20, R, 128)
    mask = prep(has_object_map, 1)      # (1,  R, 128), 0.0 in padding

    kernel = functools.partial(_yolo_loss_kernel, S=S, B=B,
                               n_sub=tile_rows // _SUBLANES)

    def in_map(c, i):
        return (0, c * steps + i, 0)

    out = pl.pallas_call(
        kernel,
        out_shape=jax.ShapeDtypeStruct((_NUM_SPLITS, 4, _SUBLANES, _LANES),
                                       jnp.float32),
        grid_spec=pltpu.PrefetchScalarGridSpec(
            num_scalar_prefetch=0,
            grid=(_NUM_SPLITS, steps),
            in_specs=[
                pl.BlockSpec((C, tile_rows, _LANES), in_map),
                pl.BlockSpec((4, tile_rows, _LANES), in_map),
                pl.BlockSpec((20, tile_rows, _LANES), in_map),
                pl.BlockSpec((1, tile_rows, _LANES), in_map),
            ],
            out_specs=pl.BlockSpec((1, 4, _SUBLANES, _LANES),
                                   lambda c, i: (c, 0, 0, 0)),
        ),
        compiler_params=pltpu.CompilerParams(
            dimension_semantics=("parallel", "arbitrary")),
    )(pred, tbox, tcls, mask)

    part = jnp.sum(out, axis=(0, 2, 3))                        # (4,)
    cls_loss = part[0]
    no_obj_loss = jnp.float32(l_noobj) * part[1]
    contain_loss = part[2]
    reg_loss = jnp.float32(l_coord) * part[3]
    total_loss = (cls_loss + no_obj_loss + contain_loss + reg_loss) / N
    return dict(total_loss=total_loss,
                reg_loss=reg_loss,
                containing_obj_loss=contain_loss,
                no_obj_loss=no_obj_loss,
                cls_loss=cls_loss)


def _yolo_loss_reference(pred_tensor, target_boxes, target_cls, has_object_map,
                         *, S, B, l_coord, l_noobj):
    """Pure-JAX reference mirroring the PyTorch module (masked form)."""
    N = pred_tensor.shape[0]
    M = N * S * S
    pred = pred_tensor.reshape(M, B * 5 + 20).astype(jnp.float32)
    tbox = target_boxes.reshape(M, 4).astype(jnp.float32)
    tcls = target_cls.reshape(M, 20).astype(jnp.float32)
    obj = has_object_map.reshape(M).astype(jnp.float32)
    noobj = 1.0 - obj

    cls_loss = jnp.sum(obj * jnp.sum((pred[:, B * 5:] - tcls) ** 2, axis=-1))

    def to_xyxy(b):
        return (b[:, 0] / S - b[:, 2] / 2, b[:, 1] / S - b[:, 3] / 2,
                b[:, 0] / S + b[:, 2] / 2, b[:, 1] / S + b[:, 3] / 2)

    tx1, ty1, tx2, ty2 = to_xyxy(tbox)
    t_area = (tx2 - tx1) * (ty2 - ty1)

    no_obj_loss = 0.0
    best_iou, best_box = None, None
    for b in range(B):
        box = pred[:, b * 5:(b + 1) * 5]
        no_obj_loss = no_obj_loss + jnp.sum(noobj * box[:, 4] ** 2)
        px1, py1, px2, py2 = to_xyxy(box)
        p_area = (px2 - px1) * (py2 - py1)
        iw = jnp.maximum(jnp.minimum(px2, tx2) - jnp.maximum(px1, tx1), 0.0)
        ih = jnp.maximum(jnp.minimum(py2, ty2) - jnp.maximum(py1, ty1), 0.0)
        inter = iw * ih
        iou = inter / (p_area + t_area - inter)
        if b == 0:
            best_iou, best_box = iou, box
        else:
            better = iou > best_iou
            best_iou = jnp.where(better, iou, best_iou)
            best_box = jnp.where(better[:, None], box, best_box)
    no_obj_loss = l_noobj * no_obj_loss

    contain_loss = jnp.sum(jnp.where(obj > 0, (best_box[:, 4] - best_iou) ** 2, 0.0))
    d_xy = jnp.sum((best_box[:, :2] - tbox[:, :2]) ** 2, axis=-1)
    d_wh = jnp.sum((jnp.sqrt(best_box[:, 2:4]) - jnp.sqrt(tbox[:, 2:4])) ** 2, axis=-1)
    reg_loss = l_coord * jnp.sum(jnp.where(obj > 0, d_xy + d_wh, 0.0))

    total = (cls_loss + no_obj_loss + contain_loss + reg_loss) / N
    return dict(total_loss=total, reg_loss=reg_loss,
                containing_obj_loss=contain_loss,
                no_obj_loss=no_obj_loss, cls_loss=cls_loss)


if __name__ == "__main__":
    S, B = 4, 2
    l_coord, l_noobj = 5.0, 0.5
    N = 2

    key = jax.random.PRNGKey(0)
    k1, k2, k3, k4 = jax.random.split(key, 4)

    # pred_tensor: (N, S, S, B*5 + 20); x,y,w,h,conf in [0,1] (post-sigmoid-like)
    pred_tensor = jax.random.uniform(k1, (N, S, S, B * 5 + 20), dtype=jnp.float32)
    # target boxes: (N, S, S, 4) with positive w, h
    target_boxes = jax.random.uniform(k2, (N, S, S, 4), dtype=jnp.float32,
                                      minval=0.05, maxval=0.95)
    # target classes: (N, S, S, 20)
    target_cls = jax.random.uniform(k3, (N, S, S, 20), dtype=jnp.float32)
    # has_object_map: (N, S, S) bool
    has_object_map = jax.random.uniform(k4, (N, S, S)) > 0.5

    loss_dict = yolo_loss(pred_tensor, target_boxes, target_cls, has_object_map,
                          S=S, B=B, l_coord=l_coord, l_noobj=l_noobj)
    loss_dict = jax.tree_util.tree_map(jax.block_until_ready, loss_dict)

    ref_dict = _yolo_loss_reference(pred_tensor, target_boxes, target_cls,
                                    has_object_map, S=S, B=B,
                                    l_coord=l_coord, l_noobj=l_noobj)
    for k in loss_dict:
        a = float(loss_dict[k])
        b = float(ref_dict[k])
        assert abs(a - b) <= 2e-3 * (1.0 + abs(b)), (k, a, b)

    print("KERNEL_OK")
</pallas_src>

<mosaic_0001>
module attributes {stable_mosaic.version = 11 : i64} {
  func.func @_yolo_loss_kernel(%arg0: i32, %arg1: i32, %arg2: memref<30x8x128xf32, #tpu.memory_space<vmem>>, %arg3: memref<4x8x128xf32, #tpu.memory_space<vmem>>, %arg4: memref<20x8x128xf32, #tpu.memory_space<vmem>>, %arg5: memref<1x8x128xf32, #tpu.memory_space<vmem>>, %arg6: memref<1x4x8x128xf32, #tpu.memory_space<vmem>>) attributes {dimension_semantics = [#tpu.dimension_semantics<parallel>, #tpu.dimension_semantics<arbitrary>], iteration_bounds = array<i64: 2, 1>, scalar_prefetch = 0 : i64, scratch_operands = 0 : i64, tpu.core_type = #tpu.core_type<tc>, window_params = [{transform_indices = @transform_0, window_bounds = array<i64: 30, 8, 128>}, {transform_indices = @transform_1, window_bounds = array<i64: 4, 8, 128>}, {transform_indices = @transform_2, window_bounds = array<i64: 20, 8, 128>}, {transform_indices = @transform_3, window_bounds = array<i64: 1, 8, 128>}, {transform_indices = @transform_4, window_bounds = array<i64: 1, 4, 8, 128>}]} {
    %c0_i32 = arith.constant 0 : i32
    %0 = arith.cmpi eq, %arg1, %c0_i32 : i32
    %1 = arith.extui %0 : i1 to i32
    %c0_i32_0 = arith.constant 0 : i32
    %2 = arith.cmpi ne, %1, %c0_i32_0 : i32
    scf.if %2 {
      %cst_128 = arith.constant 0.000000e+00 : f32
      %385 = vector.broadcast %cst_128 : f32 to vector<1x4x8x128xf32>
      %c0_129 = arith.constant 0 : index
      %c0_130 = arith.constant 0 : index
      %c0_131 = arith.constant 0 : index
      %c0_132 = arith.constant 0 : index
      %386 = vector.load %arg6[%c0_129, %c0_130, %c0_131, %c0_132] : memref<1x4x8x128xf32, #tpu.memory_space<vmem>>, vector<1x4x8x128xf32>
      tpu.vector_store %arg6[%c0_129, %c0_130, %c0_131, %c0_132], %385 {strides = array<i32>} : memref<1x4x8x128xf32, #tpu.memory_space<vmem>>, vector<1x4x8x128xf32>,
    } else {
    }
    %cst = arith.constant 0.000000e+00 : f32
    %3 = vector.broadcast %cst : f32 to vector<8x128xf32>
    %cst_1 = arith.constant 2.500000e-01 : f32
    %cst_2 = arith.constant 5.000000e-01 : f32
    %c0_i32_3 = arith.constant 0 : i32
    %c8_i32 = arith.constant 8 : i32
    %4 = arith.muli %c0_i32_3, %c8_i32 : i32
    %5 = tpu.assume_multiple %4, 8 : i32
    %c0 = arith.constant 0 : index
    %6 = arith.index_cast %5 : i32 to index
    %c0_4 = arith.constant 0 : index
    %7 = vector.load %arg5[%c0, %6, %c0_4] : memref<1x8x128xf32, #tpu.memory_space<vmem>>, vector<1x8x128xf32>
    %8 = vector.shape_cast %7 : vector<1x8x128xf32> to vector<8x128xf32>
    %cst_5 = arith.constant 1.000000e+00 : f32
    %9 = vector.broadcast %cst_5 : f32 to vector<8x128xf32>
    %10 = arith.subf %9, %8 : vector<8x128xf32>
    %cst_6 = arith.constant 0.000000e+00 : f32
    %11 = vector.broadcast %cst_6 : f32 to vector<8x128xf32>
    %c10 = arith.constant 10 : index
    %12 = arith.index_cast %5 : i32 to index
    %c0_7 = arith.constant 0 : index
    %13 = vector.load %arg2[%c10, %12, %c0_7] : memref<30x8x128xf32, #tpu.memory_space<vmem>>, vector<1x8x128xf32>
    %14 = vector.shape_cast %13 : vector<1x8x128xf32> to vector<8x128xf32>
    %c0_8 = arith.constant 0 : index
    %15 = arith.index_cast %5 : i32 to index
    %c0_9 = arith.constant 0 : index
    %16 = vector.load %arg4[%c0_8, %15, %c0_9] : memref<20x8x128xf32, #tpu.memory_space<vmem>>, vector<1x8x128xf32>
    %17 = vector.shape_cast %16 : vector<1x8x128xf32> to vector<8x128xf32>
    %18 = arith.subf %14, %17 : vector<8x128xf32>
    %19 = arith.mulf %18, %18 : vector<8x128xf32>
    %20 = arith.addf %11, %19 : vector<8x128xf32>
    %c11 = arith.constant 11 : index
    %21 = arith.index_cast %5 : i32 to index
    %c0_10 = arith.constant 0 : index
    %22 = vector.load %arg2[%c11, %21, %c0_10] : memref<30x8x128xf32, #tpu.memory_space<vmem>>, vector<1x8x128xf32>
    %23 = vector.shape_cast %22 : vector<1x8x128xf32> to vector<8x128xf32>
    %c1 = arith.constant 1 : index
    %24 = arith.index_cast %5 : i32 to index
    %c0_11 = arith.constant 0 : index
    %25 = vector.load %arg4[%c1, %24, %c0_11] : memref<20x8x128xf32, #tpu.memory_space<vmem>>, vector<1x8x128xf32>
    %26 = vector.shape_cast %25 : vector<1x8x128xf32> to vector<8x128xf32>
    %27 = arith.subf %23, %26 : vector<8x128xf32>
    %28 = arith.mulf %27, %27 : vector<8x128xf32>
    %29 = arith.addf %20, %28 : vector<8x128xf32>
    %c12 = arith.constant 12 : index
    %30 = arith.index_cast %5 : i32 to index
    %c0_12 = arith.constant 0 : index
    %31 = vector.load %arg2[%c12, %30, %c0_12] : memref<30x8x128xf32, #tpu.memory_space<vmem>>, vector<1x8x128xf32>
    %32 = vector.shape_cast %31 : vector<1x8x128xf32> to vector<8x128xf32>
    %c2 = arith.constant 2 : index
    %33 = arith.index_cast %5 : i32 to index
    %c0_13 = arith.constant 0 : index
    %34 = vector.load %arg4[%c2, %33, %c0_13] : memref<20x8x128xf32, #tpu.memory_space<vmem>>, vector<1x8x128xf32>
    %35 = vector.shape_cast %34 : vector<1x8x128xf32> to vector<8x128xf32>
    %36 = arith.subf %32, %35 : vector<8x128xf32>
    %37 = arith.mulf %36, %36 : vector<8x128xf32>
    %38 = arith.addf %29, %37 : vector<8x128xf32>
    %c13 = arith.constant 13 : index
    %39 = arith.index_cast %5 : i32 to index
    %c0_14 = arith.constant 0 : index
    %40 = vector.load %arg2[%c13, %39, %c0_14] : memref<30x8x128xf32, #tpu.memory_space<vmem>>, vector<1x8x128xf32>
    %41 = vector.shape_cast %40 : vector<1x8x128xf32> to vector<8x128xf32>
    %c3 = arith.constant 3 : index
    %42 = arith.index_cast %5 : i32 to index
    %c0_15 = arith.constant 0 : index
    %43 = vector.load %arg4[%c3, %42, %c0_15] : memref<20x8x128xf32, #tpu.memory_space<vmem>>, vector<1x8x128xf32>
    %44 = vector.shape_cast %43 : vector<1x8x128xf32> to vector<8x128xf32>
    %45 = arith.subf %41, %44 : vector<8x128xf32>
    %46 = arith.mulf %45, %45 : vector<8x128xf32>
    %47 = arith.addf %38, %46 : vector<8x128xf32>
    %c14 = arith.constant 14 : index
    %48 = arith.index_cast %5 : i32 to index
    %c0_16 = arith.constant 0 : index
    %49 = vector.load %arg2[%c14, %48, %c0_16] : memref<30x8x128xf32, #tpu.memory_space<vmem>>, vector<1x8x128xf32>
    %50 = vector.shape_cast %49 : vector<1x8x128xf32> to vector<8x128xf32>
    %c4 = arith.constant 4 : index
    %51 = arith.index_cast %5 : i32 to index
    %c0_17 = arith.constant 0 : index
    %52 = vector.load %arg4[%c4, %51, %c0_17] : memref<20x8x128xf32, #tpu.memory_space<vmem>>, vector<1x8x128xf32>
    %53 = vector.shape_cast %52 : vector<1x8x128xf32> to vector<8x128xf32>
    %54 = arith.subf %50, %53 : vector<8x128xf32>
    %55 = arith.mulf %54, %54 : vector<8x128xf32>
    %56 = arith.addf %47, %55 : vector<8x128xf32>
    %c15 = arith.constant 15 : index
    %57 = arith.index_cast %5 : i32 to index
    %c0_18 = arith.constant 0 : index
    %58 = vector.load %arg2[%c15, %57, %c0_18] : memref<30x8x128xf32, #tpu.memory_space<vmem>>, vector<1x8x128xf32>
    %59 = vector.shape_cast %58 : vector<1x8x128xf32> to vector<8x128xf32>
    %c5 = arith.constant 5 : index
    %60 = arith.index_cast %5 : i32 to index
    %c0_19 = arith.constant 0 : index
    %61 = vector.load %arg4[%c5, %60, %c0_19] : memref<20x8x128xf32, #tpu.memory_space<vmem>>, vector<1x8x128xf32>
    %62 = vector.shape_cast %61 : vector<1x8x128xf32> to vector<8x128xf32>
    %63 = arith.subf %59, %62 : vector<8x128xf32>
    %64 = arith.mulf %63, %63 : vector<8x128xf32>
    %65 = arith.addf %56, %64 : vector<8x128xf32>
    %c16 = arith.constant 16 : index
    %66 = arith.index_cast %5 : i32 to index
    %c0_20 = arith.constant 0 : index
    %67 = vector.load %arg2[%c16, %66, %c0_20] : memref<30x8x128xf32, #tpu.memory_space<vmem>>, vector<1x8x128xf32>
    %68 = vector.shape_cast %67 : vector<1x8x128xf32> to vector<8x128xf32>
    %c6 = arith.constant 6 : index
    %69 = arith.index_cast %5 : i32 to index
    %c0_21 = arith.constant 0 : index
    %70 = vector.load %arg4[%c6, %69, %c0_21] : memref<20x8x128xf32, #tpu.memory_space<vmem>>, vector<1x8x128xf32>
    %71 = vector.shape_cast %70 : vector<1x8x128xf32> to vector<8x128xf32>
    %72 = arith.subf %68, %71 : vector<8x128xf32>
    %73 = arith.mulf %72, %72 : vector<8x128xf32>
    %74 = arith.addf %65, %73 : vector<8x128xf32>
    %c17 = arith.constant 17 : index
    %75 = arith.index_cast %5 : i32 to index
    %c0_22 = arith.constant 0 : index
    %76 = vector.load %arg2[%c17, %75, %c0_22] : memref<30x8x128xf32, #tpu.memory_space<vmem>>, vector<1x8x128xf32>
    %77 = vector.shape_cast %76 : vector<1x8x128xf32> to vector<8x128xf32>
    %c7 = arith.constant 7 : index
    %78 = arith.index_cast %5 : i32 to index
    %c0_23 = arith.constant 0 : index
    %79 = vector.load %arg4[%c7, %78, %c0_23] : memref<20x8x128xf32, #tpu.memory_space<vmem>>, vector<1x8x128xf32>
    %80 = vector.shape_cast %79 : vector<1x8x128xf32> to vector<8x128xf32>
    %81 = arith.subf %77, %80 : vector<8x128xf32>
    %82 = arith.mulf %81, %81 : vector<8x128xf32>
    %83 = arith.addf %74, %82 : vector<8x128xf32>
    %c18 = arith.constant 18 : index
    %84 = arith.index_cast %5 : i32 to index
    %c0_24 = arith.constant 0 : index
    %85 = vector.load %arg2[%c18, %84, %c0_24] : memref<30x8x128xf32, #tpu.memory_space<vmem>>, vector<1x8x128xf32>
    %86 = vector.shape_cast %85 : vector<1x8x128xf32> to vector<8x128xf32>
    %c8 = arith.constant 8 : index
    %87 = arith.index_cast %5 : i32 to index
    %c0_25 = arith.constant 0 : index
    %88 = vector.load %arg4[%c8, %87, %c0_25] : memref<20x8x128xf32, #tpu.memory_space<vmem>>, vector<1x8x128xf32>
    %89 = vector.shape_cast %88 : vector<1x8x128xf32> to vector<8x128xf32>
    %90 = arith.subf %86, %89 : vector<8x128xf32>
    %91 = arith.mulf %90, %90 : vector<8x128xf32>
    %92 = arith.addf %83, %91 : vector<8x128xf32>
    %c19 = arith.constant 19 : index
    %93 = arith.index_cast %5 : i32 to index
    %c0_26 = arith.constant 0 : index
    %94 = vector.load %arg2[%c19, %93, %c0_26] : memref<30x8x128xf32, #tpu.memory_space<vmem>>, vector<1x8x128xf32>
    %95 = vector.shape_cast %94 : vector<1x8x128xf32> to vector<8x128xf32>
    %c9 = arith.constant 9 : index
    %96 = arith.index_cast %5 : i32 to index
    %c0_27 = arith.constant 0 : index
    %97 = vector.load %arg4[%c9, %96, %c0_27] : memref<20x8x128xf32, #tpu.memory_space<vmem>>, vector<1x8x128xf32>
    %98 = vector.shape_cast %97 : vector<1x8x128xf32> to vector<8x128xf32>
    %99 = arith.subf %95, %98 : vector<8x128xf32>
    %100 = arith.mulf %99, %99 : vector<8x128xf32>
    %101 = arith.addf %92, %100 : vector<8x128xf32>
    %c20 = arith.constant 20 : index
    %102 = arith.index_cast %5 : i32 to index
    %c0_28 = arith.constant 0 : index
    %103 = vector.load %arg2[%c20, %102, %c0_28] : memref<30x8x128xf32, #tpu.memory_space<vmem>>, vector<1x8x128xf32>
    %104 = vector.shape_cast %103 : vector<1x8x128xf32> to vector<8x128xf32>
    %c10_29 = arith.constant 10 : index
    %105 = arith.index_cast %5 : i32 to index
    %c0_30 = arith.constant 0 : index
    %106 = vector.load %arg4[%c10_29, %105, %c0_30] : memref<20x8x128xf32, #tpu.memory_space<vmem>>, vector<1x8x128xf32>
    %107 = vector.shape_cast %106 : vector<1x8x128xf32> to vector<8x128xf32>
    %108 = arith.subf %104, %107 : vector<8x128xf32>
    %109 = arith.mulf %108, %108 : vector<8x128xf32>
    %110 = arith.addf %101, %109 : vector<8x128xf32>
    %c21 = arith.constant 21 : index
    %111 = arith.index_cast %5 : i32 to index
    %c0_31 = arith.constant 0 : index
    %112 = vector.load %arg2[%c21, %111, %c0_31] : memref<30x8x128xf32, #tpu.memory_space<vmem>>, vector<1x8x128xf32>
    %113 = vector.shape_cast %112 : vector<1x8x128xf32> to vector<8x128xf32>
    %c11_32 = arith.constant 11 : index
    %114 = arith.index_cast %5 : i32 to index
    %c0_33 = arith.constant 0 : index
    %115 = vector.load %arg4[%c11_32, %114, %c0_33] : memref<20x8x128xf32, #tpu.memory_space<vmem>>, vector<1x8x128xf32>
    %116 = vector.shape_cast %115 : vector<1x8x128xf32> to vector<8x128xf32>
    %117 = arith.subf %113, %116 : vector<8x128xf32>
    %118 = arith.mulf %117, %117 : vector<8x128xf32>
    %119 = arith.addf %110, %118 : vector<8x128xf32>
    %c22 = arith.constant 22 : index
    %120 = arith.index_cast %5 : i32 to index
    %c0_34 = arith.constant 0 : index
    %121 = vector.load %arg2[%c22, %120, %c0_34] : memref<30x8x128xf32, #tpu.memory_space<vmem>>, vector<1x8x128xf32>
    %122 = vector.shape_cast %121 : vector<1x8x128xf32> to vector<8x128xf32>
    %c12_35 = arith.constant 12 : index
    %123 = arith.index_cast %5 : i32 to index
    %c0_36 = arith.constant 0 : index
    %124 = vector.load %arg4[%c12_35, %123, %c0_36] : memref<20x8x128xf32, #tpu.memory_space<vmem>>, vector<1x8x128xf32>
    %125 = vector.shape_cast %124 : vector<1x8x128xf32> to vector<8x128xf32>
    %126 = arith.subf %122, %125 : vector<8x128xf32>
    %127 = arith.mulf %126, %126 : vector<8x128xf32>
    %128 = arith.addf %119, %127 : vector<8x128xf32>
    %c23 = arith.constant 23 : index
    %129 = arith.index_cast %5 : i32 to index
    %c0_37 = arith.constant 0 : index
    %130 = vector.load %arg2[%c23, %129, %c0_37] : memref<30x8x128xf32, #tpu.memory_space<vmem>>, vector<1x8x128xf32>
    %131 = vector.shape_cast %130 : vector<1x8x128xf32> to vector<8x128xf32>
    %c13_38 = arith.constant 13 : index
    %132 = arith.index_cast %5 : i32 to index
    %c0_39 = arith.constant 0 : index
    %133 = vector.load %arg4[%c13_38, %132, %c0_39] : memref<20x8x128xf32, #tpu.memory_space<vmem>>, vector<1x8x128xf32>
    %134 = vector.shape_cast %133 : vector<1x8x128xf32> to vector<8x128xf32>
    %135 = arith.subf %131, %134 : vector<8x128xf32>
    %136 = arith.mulf %135, %135 : vector<8x128xf32>
    %137 = arith.addf %128, %136 : vector<8x128xf32>
    %c24 = arith.constant 24 : index
    %138 = arith.index_cast %5 : i32 to index
    %c0_40 = arith.constant 0 : index
    %139 = vector.load %arg2[%c24, %138, %c0_40] : memref<30x8x128xf32, #tpu.memory_space<vmem>>, vector<1x8x128xf32>
    %140 = vector.shape_cast %139 : vector<1x8x128xf32> to vector<8x128xf32>
    %c14_41 = arith.constant 14 : index
    %141 = arith.index_cast %5 : i32 to index
    %c0_42 = arith.constant 0 : index
    %142 = vector.load %arg4[%c14_41, %141, %c0_42] : memref<20x8x128xf32, #tpu.memory_space<vmem>>, vector<1x8x128xf32>
    %143 = vector.shape_cast %142 : vector<1x8x128xf32> to vector<8x128xf32>
    %144 = arith.subf %140, %143 : vector<8x128xf32>
    %145 = arith.mulf %144, %144 : vector<8x128xf32>
    %146 = arith.addf %137, %145 : vector<8x128xf32>
    %c25 = arith.constant 25 : index
    %147 = arith.index_cast %5 : i32 to index
    %c0_43 = arith.constant 0 : index
    %148 = vector.load %arg2[%c25, %147, %c0_43] : memref<30x8x128xf32, #tpu.memory_space<vmem>>, vector<1x8x128xf32>
    %149 = vector.shape_cast %148 : vector<1x8x128xf32> to vector<8x128xf32>
    %c15_44 = arith.constant 15 : index
    %150 = arith.index_cast %5 : i32 to index
    %c0_45 = arith.constant 0 : index
    %151 = vector.load %arg4[%c15_44, %150, %c0_45] : memref<20x8x128xf32, #tpu.memory_space<vmem>>, vector<1x8x128xf32>
    %152 = vector.shape_cast %151 : vector<1x8x128xf32> to vector<8x128xf32>
    %153 = arith.subf %149, %152 : vector<8x128xf32>
    %154 = arith.mulf %153, %153 : vector<8x128xf32>
    %155 = arith.addf %146, %154 : vector<8x128xf32>
    %c26 = arith.constant 26 : index
    %156 = arith.index_cast %5 : i32 to index
    %c0_46 = arith.constant 0 : index
    %157 = vector.load %arg2[%c26, %156, %c0_46] : memref<30x8x128xf32, #tpu.memory_space<vmem>>, vector<1x8x128xf32>
    %158 = vector.shape_cast %157 : vector<1x8x128xf32> to vector<8x128xf32>
    %c16_47 = arith.constant 16 : index
    %159 = arith.index_cast %5 : i32 to index
    %c0_48 = arith.constant 0 : index
    %160 = vector.load %arg4[%c16_47, %159, %c0_48] : memref<20x8x128xf32, #tpu.memory_space<vmem>>, vector<1x8x128xf32>
    %161 = vector.shape_cast %160 : vector<1x8x128xf32> to vector<8x128xf32>
    %162 = arith.subf %158, %161 : vector<8x128xf32>
    %163 = arith.mulf %162, %162 : vector<8x128xf32>
    %164 = arith.addf %155, %163 : vector<8x128xf32>
    %c27 = arith.constant 27 : index
    %165 = arith.index_cast %5 : i32 to index
    %c0_49 = arith.constant 0 : index
    %166 = vector.load %arg2[%c27, %165, %c0_49] : memref<30x8x128xf32, #tpu.memory_space<vmem>>, vector<1x8x128xf32>
    %167 = vector.shape_cast %166 : vector<1x8x128xf32> to vector<8x128xf32>
    %c17_50 = arith.constant 17 : index
    %168 = arith.index_cast %5 : i32 to index
    %c0_51 = arith.constant 0 : index
    %169 = vector.load %arg4[%c17_50, %168, %c0_51] : memref<20x8x128xf32, #tpu.memory_space<vmem>>, vector<1x8x128xf32>
    %170 = vector.shape_cast %169 : vector<1x8x128xf32> to vector<8x128xf32>
    %171 = arith.subf %167, %170 : vector<8x128xf32>
    %172 = arith.mulf %171, %171 : vector<8x128xf32>
    %173 = arith.addf %164, %172 : vector<8x128xf32>
    %c28 = arith.constant 28 : index
    %174 = arith.index_cast %5 : i32 to index
    %c0_52 = arith.constant 0 : index
    %175 = vector.load %arg2[%c28, %174, %c0_52] : memref<30x8x128xf32, #tpu.memory_space<vmem>>, vector<1x8x128xf32>
    %176 = vector.shape_cast %175 : vector<1x8x128xf32> to vector<8x128xf32>
    %c18_53 = arith.constant 18 : index
    %177 = arith.index_cast %5 : i32 to index
    %c0_54 = arith.constant 0 : index
    %178 = vector.load %arg4[%c18_53, %177, %c0_54] : memref<20x8x128xf32, #tpu.memory_space<vmem>>, vector<1x8x128xf32>
    %179 = vector.shape_cast %178 : vector<1x8x128xf32> to vector<8x128xf32>
    %180 = arith.subf %176, %179 : vector<8x128xf32>
    %181 = arith.mulf %180, %180 : vector<8x128xf32>
    %182 = arith.addf %173, %181 : vector<8x128xf32>
    %c29 = arith.constant 29 : index
    %183 = arith.index_cast %5 : i32 to index
    %c0_55 = arith.constant 0 : index
    %184 = vector.load %arg2[%c29, %183, %c0_55] : memref<30x8x128xf32, #tpu.memory_space<vmem>>, vector<1x8x128xf32>
    %185 = vector.shape_cast %184 : vector<1x8x128xf32> to vector<8x128xf32>
    %c19_56 = arith.constant 19 : index
    %186 = arith.index_cast %5 : i32 to index
    %c0_57 = arith.constant 0 : index
    %187 = vector.load %arg4[%c19_56, %186, %c0_57] : memref<20x8x128xf32, #tpu.memory_space<vmem>>, vector<1x8x128xf32>
    %188 = vector.shape_cast %187 : vector<1x8x128xf32> to vector<8x128xf32>
    %189 = arith.subf %185, %188 : vector<8x128xf32>
    %190 = arith.mulf %189, %189 : vector<8x128xf32>
    %191 = arith.addf %182, %190 : vector<8x128xf32>
    %192 = arith.mulf %8, %191 : vector<8x128xf32>
    %193 = arith.addf %3, %192 : vector<8x128xf32>
    %c0_58 = arith.constant 0 : index
    %194 = arith.index_cast %5 : i32 to index
    %c0_59 = arith.constant 0 : index
    %195 = vector.load %arg3[%c0_58, %194, %c0_59] : memref<4x8x128xf32, #tpu.memory_space<vmem>>, vector<1x8x128xf32>
    %196 = vector.shape_cast %195 : vector<1x8x128xf32> to vector<8x128xf32>
    %c1_60 = arith.constant 1 : index
    %197 = arith.index_cast %5 : i32 to index
    %c0_61 = arith.constant 0 : index
    %198 = vector.load %arg3[%c1_60, %197, %c0_61] : memref<4x8x128xf32, #tpu.memory_space<vmem>>, vector<1x8x128xf32>
    %199 = vector.shape_cast %198 : vector<1x8x128xf32> to vector<8x128xf32>
    %c2_62 = arith.constant 2 : index
    %200 = arith.index_cast %5 : i32 to index
    %c0_63 = arith.constant 0 : index
    %201 = vector.load %arg3[%c2_62, %200, %c0_63] : memref<4x8x128xf32, #tpu.memory_space<vmem>>, vector<1x8x128xf32>
    %202 = vector.shape_cast %201 : vector<1x8x128xf32> to vector<8x128xf32>
    %c3_64 = arith.constant 3 : index
    %203 = arith.index_cast %5 : i32 to index
    %c0_65 = arith.constant 0 : index
    %204 = vector.load %arg3[%c3_64, %203, %c0_65] : memref<4x8x128xf32, #tpu.memory_space<vmem>>, vector<1x8x128xf32>
    %205 = vector.shape_cast %204 : vector<1x8x128xf32> to vector<8x128xf32>
    %206 = vector.broadcast %cst_1 : f32 to vector<8x128xf32>
    %207 = arith.mulf %196, %206 : vector<8x128xf32>
    %208 = vector.broadcast %cst_1 : f32 to vector<8x128xf32>
    %209 = arith.mulf %199, %208 : vector<8x128xf32>
    %210 = vector.broadcast %cst_2 : f32 to vector<8x128xf32>
    %211 = arith.mulf %202, %210 : vector<8x128xf32>
    %212 = arith.subf %207, %211 : vector<8x128xf32>
    %213 = vector.broadcast %cst_2 : f32 to vector<8x128xf32>
    %214 = arith.mulf %202, %213 : vector<8x128xf32>
    %215 = arith.addf %207, %214 : vector<8x128xf32>
    %216 = vector.broadcast %cst_2 : f32 to vector<8x128xf32>
    %217 = arith.mulf %205, %216 : vector<8x128xf32>
    %218 = arith.subf %209, %217 : vector<8x128xf32>
    %219 = vector.broadcast %cst_2 : f32 to vector<8x128xf32>
    %220 = arith.mulf %205, %219 : vector<8x128xf32>
    %221 = arith.addf %209, %220 : vector<8x128xf32>
    %222 = arith.mulf %202, %205 : vector<8x128xf32>
    %cst_66 = arith.constant 0.000000e+00 : f32
    %223 = vector.broadcast %cst_66 : f32 to vector<8x128xf32>
    %c0_67 = arith.constant 0 : index
    %224 = arith.index_cast %5 : i32 to index
    %c0_68 = arith.constant 0 : index
    %225 = vector.load %arg2[%c0_67, %224, %c0_68] : memref<30x8x128xf32, #tpu.memory_space<vmem>>, vector<1x8x128xf32>
    %226 = vector.shape_cast %225 : vector<1x8x128xf32> to vector<8x128xf32>
    %c1_69 = arith.constant 1 : index
    %227 = arith.index_cast %5 : i32 to index
    %c0_70 = arith.constant 0 : index
    %228 = vector.load %arg2[%c1_69, %227, %c0_70] : memref<30x8x128xf32, #tpu.memory_space<vmem>>, vector<1x8x128xf32>
    %229 = vector.shape_cast %228 : vector<1x8x128xf32> to vector<8x128xf32>
    %c2_71 = arith.constant 2 : index
    %230 = arith.index_cast %5 : i32 to index
    %c0_72 = arith.constant 0 : index
    %231 = vector.load %arg2[%c2_71, %230, %c0_72] : memref<30x8x128xf32, #tpu.memory_space<vmem>>, vector<1x8x128xf32>
    %232 = vector.shape_cast %231 : vector<1x8x128xf32> to vector<8x128xf32>
    %c3_73 = arith.constant 3 : index
    %233 = arith.index_cast %5 : i32 to index
    %c0_74 = arith.constant 0 : index
    %234 = vector.load %arg2[%c3_73, %233, %c0_74] : memref<30x8x128xf32, #tpu.memory_space<vmem>>, vector<1x8x128xf32>
    %235 = vector.shape_cast %234 : vector<1x8x128xf32> to vector<8x128xf32>
    %c4_75 = arith.constant 4 : index
    %236 = arith.index_cast %5 : i32 to index
    %c0_76 = arith.constant 0 : index
    %237 = vector.load %arg2[%c4_75, %236, %c0_76] : memref<30x8x128xf32, #tpu.memory_space<vmem>>, vector<1x8x128xf32>
    %238 = vector.shape_cast %237 : vector<1x8x128xf32> to vector<8x128xf32>
    %239 = arith.mulf %238, %238 : vector<8x128xf32>
    %240 = arith.addf %223, %239 : vector<8x128xf32>
    %241 = vector.broadcast %cst_1 : f32 to vector<8x128xf32>
    %242 = arith.mulf %226, %241 : vector<8x128xf32>
    %243 = vector.broadcast %cst_1 : f32 to vector<8x128xf32>
    %244 = arith.mulf %229, %243 : vector<8x128xf32>
    %245 = vector.broadcast %cst_2 : f32 to vector<8x128xf32>
    %246 = arith.mulf %232, %245 : vector<8x128xf32>
    %247 = arith.subf %242, %246 : vector<8x128xf32>
    %248 = vector.broadcast %cst_2 : f32 to vector<8x128xf32>
    %249 = arith.mulf %232, %248 : vector<8x128xf32>
    %250 = arith.addf %242, %249 : vector<8x128xf32>
    %251 = vector.broadcast %cst_2 : f32 to vector<8x128xf32>
    %252 = arith.mulf %235, %251 : vector<8x128xf32>
    %253 = arith.subf %244, %252 : vector<8x128xf32>
    %254 = vector.broadcast %cst_2 : f32 to vector<8x128xf32>
    %255 = arith.mulf %235, %254 : vector<8x128xf32>
    %256 = arith.addf %244, %255 : vector<8x128xf32>
    %257 = arith.mulf %232, %235 : vector<8x128xf32>
    %258 = arith.minimumf %250, %215 : vector<8x128xf32>
    %259 = arith.maximumf %247, %212 : vector<8x128xf32>
    %260 = arith.subf %258, %259 : vector<8x128xf32>
    %cst_77 = arith.constant 0.000000e+00 : f32
    %261 = vector.broadcast %cst_77 : f32 to vector<8x128xf32>
    %262 = arith.maximumf %260, %261 : vector<8x128xf32>
    %263 = arith.minimumf %256, %221 : vector<8x128xf32>
    %264 = arith.maximumf %253, %218 : vector<8x128xf32>
    %265 = arith.subf %263, %264 : vector<8x128xf32>
    %cst_78 = arith.constant 0.000000e+00 : f32
    %266 = vector.broadcast %cst_78 : f32 to vector<8x128xf32>
    %267 = arith.maximumf %265, %266 : vector<8x128xf32>
    %268 = arith.mulf %262, %267 : vector<8x128xf32>
    %269 = arith.addf %257, %222 : vector<8x128xf32>
    %270 = arith.subf %269, %268 : vector<8x128xf32>
    %c5_79 = arith.constant 5 : index
    %271 = arith.index_cast %5 : i32 to index
    %c0_80 = arith.constant 0 : index
    %272 = vector.load %arg2[%c5_79, %271, %c0_80] : memref<30x8x128xf32, #tpu.memory_space<vmem>>, vector<1x8x128xf32>
    %273 = vector.shape_cast %272 : vector<1x8x128xf32> to vector<8x128xf32>
    %c6_81 = arith.constant 6 : index
    %274 = arith.index_cast %5 : i32 to index
    %c0_82 = arith.constant 0 : index
    %275 = vector.load %arg2[%c6_81, %274, %c0_82] : memref<30x8x128xf32, #tpu.memory_space<vmem>>, vector<1x8x128xf32>
    %276 = vector.shape_cast %275 : vector<1x8x128xf32> to vector<8x128xf32>
    %c7_83 = arith.constant 7 : index
    %277 = arith.index_cast %5 : i32 to index
    %c0_84 = arith.constant 0 : index
    %278 = vector.load %arg2[%c7_83, %277, %c0_84] : memref<30x8x128xf32, #tpu.memory_space<vmem>>, vector<1x8x128xf32>
    %279 = vector.shape_cast %278 : vector<1x8x128xf32> to vector<8x128xf32>
    %c8_85 = arith.constant 8 : index
    %280 = arith.index_cast %5 : i32 to index
    %c0_86 = arith.constant 0 : index
    %281 = vector.load %arg2[%c8_85, %280, %c0_86] : memref<30x8x128xf32, #tpu.memory_space<vmem>>, vector<1x8x128xf32>
    %282 = vector.shape_cast %281 : vector<1x8x128xf32> to vector<8x128xf32>
    %c9_87 = arith.constant 9 : index
    %283 = arith.index_cast %5 : i32 to index
    %c0_88 = arith.constant 0 : index
    %284 = vector.load %arg2[%c9_87, %283, %c0_88] : memref<30x8x128xf32, #tpu.memory_space<vmem>>, vector<1x8x128xf32>
    %285 = vector.shape_cast %284 : vector<1x8x128xf32> to vector<8x128xf32>
    %286 = arith.mulf %285, %285 : vector<8x128xf32>
    %287 = arith.addf %240, %286 : vector<8x128xf32>
    %288 = vector.broadcast %cst_1 : f32 to vector<8x128xf32>
    %289 = arith.mulf %273, %288 : vector<8x128xf32>
    %290 = vector.broadcast %cst_1 : f32 to vector<8x128xf32>
    %291 = arith.mulf %276, %290 : vector<8x128xf32>
    %292 = vector.broadcast %cst_2 : f32 to vector<8x128xf32>
    %293 = arith.mulf %279, %292 : vector<8x128xf32>
    %294 = arith.subf %289, %293 : vector<8x128xf32>
    %295 = vector.broadcast %cst_2 : f32 to vector<8x128xf32>
    %296 = arith.mulf %279, %295 : vector<8x128xf32>
    %297 = arith.addf %289, %296 : vector<8x128xf32>
    %298 = vector.broadcast %cst_2 : f32 to vector<8x128xf32>
    %299 = arith.mulf %282, %298 : vector<8x128xf32>
    %300 = arith.subf %291, %299 : vector<8x128xf32>
    %301 = vector.broadcast %cst_2 : f32 to vector<8x128xf32>
    %302 = arith.mulf %282, %301 : vector<8x128xf32>
    %303 = arith.addf %291, %302 : vector<8x128xf32>
    %304 = arith.mulf %279, %282 : vector<8x128xf32>
    %305 = arith.minimumf %297, %215 : vector<8x128xf32>
    %306 = arith.maximumf %294, %212 : vector<8x128xf32>
    %307 = arith.subf %305, %306 : vector<8x128xf32>
    %cst_89 = arith.constant 0.000000e+00 : f32
    %308 = vector.broadcast %cst_89 : f32 to vector<8x128xf32>
    %309 = arith.maximumf %307, %308 : vector<8x128xf32>
    %310 = arith.minimumf %303, %221 : vector<8x128xf32>
    %311 = arith.maximumf %300, %218 : vector<8x128xf32>
    %312 = arith.subf %310, %311 : vector<8x128xf32>
    %cst_90 = arith.constant 0.000000e+00 : f32
    %313 = vector.broadcast %cst_90 : f32 to vector<8x128xf32>
    %314 = arith.maximumf %312, %313 : vector<8x128xf32>
    %315 = arith.mulf %309, %314 : vector<8x128xf32>
    %316 = arith.addf %304, %222 : vector<8x128xf32>
    %317 = arith.subf %316, %315 : vector<8x128xf32>
    %318 = arith.mulf %315, %270 : vector<8x128xf32>
    %319 = arith.mulf %268, %317 : vector<8x128xf32>
    %320 = arith.cmpf ogt, %318, %319 : vector<8x128xf32>
    %321 = arith.select %320, %315, %268 : vector<8x128xi1>, vector<8x128xf32>
    %322 = arith.select %320, %317, %270 : vector<8x128xi1>, vector<8x128xf32>
    %323 = arith.select %320, %273, %226 : vector<8x128xi1>, vector<8x128xf32>
    %324 = arith.select %320, %276, %229 : vector<8x128xi1>, vector<8x128xf32>
    %325 = arith.select %320, %279, %232 : vector<8x128xi1>, vector<8x128xf32>
    %326 = arith.select %320, %282, %235 : vector<8x128xi1>, vector<8x128xf32>
    %327 = arith.select %320, %285, %238 : vector<8x128xi1>, vector<8x128xf32>
    %328 = arith.mulf %10, %287 : vector<8x128xf32>
    %329 = arith.addf %3, %328 : vector<8x128xf32>
    %cst_91 = arith.constant 0.000000e+00 : f32
    %330 = vector.broadcast %cst_91 : f32 to vector<8x128xf32>
    %331 = arith.cmpf ogt, %322, %330 : vector<8x128xf32>
    %cst_92 = arith.constant 0.000000e+00 : f32
    %332 = vector.broadcast %cst_92 : f32 to vector<8x128xf32>
    %333 = arith.select %331, %321, %332 : vector<8x128xi1>, vector<8x128xf32>
    %cst_93 = arith.constant 1.000000e+00 : f32
    %334 = vector.broadcast %cst_93 : f32 to vector<8x128xf32>
    %335 = arith.select %331, %322, %334 : vector<8x128xi1>, vector<8x128xf32>
    %336 = arith.divf %333, %335 : vector<8x128xf32>
    %337 = arith.subf %327, %336 : vector<8x128xf32>
    %338 = arith.mulf %337, %337 : vector<8x128xf32>
    %339 = arith.mulf %8, %338 : vector<8x128xf32>
    %340 = arith.addf %3, %339 : vector<8x128xf32>
    %341 = arith.subf %323, %196 : vector<8x128xf32>
    %342 = arith.mulf %341, %341 : vector<8x128xf32>
    %343 = arith.subf %324, %199 : vector<8x128xf32>
    %344 = arith.mulf %343, %343 : vector<8x128xf32>
    %345 = arith.addf %342, %344 : vector<8x128xf32>
    %346 = math.sqrt %325 : vector<8x128xf32>
    %347 = math.sqrt %202 : vector<8x128xf32>
    %348 = arith.subf %346, %347 : vector<8x128xf32>
    %349 = arith.mulf %348, %348 : vector<8x128xf32>
    %350 = math.sqrt %326 : vector<8x128xf32>
    %351 = math.sqrt %205 : vector<8x128xf32>
    %352 = arith.subf %350, %351 : vector<8x128xf32>
    %353 = arith.mulf %352, %352 : vector<8x128xf32>
    %354 = arith.addf %349, %353 : vector<8x128xf32>
    %cst_94 = arith.constant 0.000000e+00 : f32
    %355 = vector.broadcast %cst_94 : f32 to vector<8x128xf32>
    %356 = arith.cmpf ogt, %8, %355 : vector<8x128xf32>
    %357 = arith.addf %345, %354 : vector<8x128xf32>
    %cst_95 = arith.constant 0.000000e+00 : f32
    %358 = vector.broadcast %cst_95 : f32 to vector<8x128xf32>
    %359 = arith.select %356, %357, %358 : vector<8x128xi1>, vector<8x128xf32>
    %360 = arith.addf %3, %359 : vector<8x128xf32>
    %c1_i32 = arith.constant 1 : i32
    %c0_96 = arith.constant 0 : index
    %c0_97 = arith.constant 0 : index
    %c0_98 = arith.constant 0 : index
    %c0_99 = arith.constant 0 : index
    %361 = vector.load %arg6[%c0_96, %c0_97, %c0_98, %c0_99] : memref<1x4x8x128xf32, #tpu.memory_space<vmem>>, vector<1x1x8x128xf32>
    %362 = vector.shape_cast %361 : vector<1x1x8x128xf32> to vector<8x128xf32>
    %363 = arith.addf %362, %193 : vector<8x128xf32>
    %c0_100 = arith.constant 0 : index
    %c0_101 = arith.constant 0 : index
    %c0_102 = arith.constant 0 : index
    %c0_103 = arith.constant 0 : index
    %364 = vector.load %arg6[%c0_100, %c0_101, %c0_102, %c0_103] : memref<1x4x8x128xf32, #tpu.memory_space<vmem>>, vector<1x1x8x128xf32>
    %365 = vector.shape_cast %364 : vector<1x1x8x128xf32> to vector<8x128xf32>
    %366 = vector.shape_cast %363 : vector<8x128xf32> to vector<1x1x8x128xf32>
    tpu.vector_store %arg6[%c0_100, %c0_101, %c0_102, %c0_103], %366 {strides = array<i32>} : memref<1x4x8x128xf32, #tpu.memory_space<vmem>>, vector<1x1x8x128xf32>,
    %c0_104 = arith.constant 0 : index
    %c1_105 = arith.constant 1 : index
    %c0_106 = arith.constant 0 : index
    %c0_107 = arith.constant 0 : index
    %367 = vector.load %arg6[%c0_104, %c1_105, %c0_106, %c0_107] : memref<1x4x8x128xf32, #tpu.memory_space<vmem>>, vector<1x1x8x128xf32>
    %368 = vector.shape_cast %367 : vector<1x1x8x128xf32> to vector<8x128xf32>
    %369 = arith.addf %368, %329 : vector<8x128xf32>
    %c0_108 = arith.constant 0 : index
    %c1_109 = arith.constant 1 : index
    %c0_110 = arith.constant 0 : index
    %c0_111 = arith.constant 0 : index
    %370 = vector.load %arg6[%c0_108, %c1_109, %c0_110, %c0_111] : memref<1x4x8x128xf32, #tpu.memory_space<vmem>>, vector<1x1x8x128xf32>
    %371 = vector.shape_cast %370 : vector<1x1x8x128xf32> to vector<8x128xf32>
    %372 = vector.shape_cast %369 : vector<8x128xf32> to vector<1x1x8x128xf32>
    tpu.vector_store %arg6[%c0_108, %c1_109, %c0_110, %c0_111], %372 {strides = array<i32>} : memref<1x4x8x128xf32, #tpu.memory_space<vmem>>, vector<1x1x8x128xf32>,
    %c0_112 = arith.constant 0 : index
    %c2_113 = arith.constant 2 : index
    %c0_114 = arith.constant 0 : index
    %c0_115 = arith.constant 0 : index
    %373 = vector.load %arg6[%c0_112, %c2_113, %c0_114, %c0_115] : memref<1x4x8x128xf32, #tpu.memory_space<vmem>>, vector<1x1x8x128xf32>
    %374 = vector.shape_cast %373 : vector<1x1x8x128xf32> to vector<8x128xf32>
    %375 = arith.addf %374, %340 : vector<8x128xf32>
    %c0_116 = arith.constant 0 : index
    %c2_117 = arith.constant 2 : index
    %c0_118 = arith.constant 0 : index
    %c0_119 = arith.constant 0 : index
    %376 = vector.load %arg6[%c0_116, %c2_117, %c0_118, %c0_119] : memref<1x4x8x128xf32, #tpu.memory_space<vmem>>, vector<1x1x8x128xf32>
    %377 = vector.shape_cast %376 : vector<1x1x8x128xf32> to vector<8x128xf32>
    %378 = vector.shape_cast %375 : vector<8x128xf32> to vector<1x1x8x128xf32>
    tpu.vector_store %arg6[%c0_116, %c2_117, %c0_118, %c0_119], %378 {strides = array<i32>} : memref<1x4x8x128xf32, #tpu.memory_space<vmem>>, vector<1x1x8x128xf32>,
    %c0_120 = arith.constant 0 : index
    %c3_121 = arith.constant 3 : index
    %c0_122 = arith.constant 0 : index
    %c0_123 = arith.constant 0 : index
    %379 = vector.load %arg6[%c0_120, %c3_121, %c0_122, %c0_123] : memref<1x4x8x128xf32, #tpu.memory_space<vmem>>, vector<1x1x8x128xf32>
    %380 = vector.shape_cast %379 : vector<1x1x8x128xf32> to vector<8x128xf32>
    %381 = arith.addf %380, %360 : vector<8x128xf32>
    %c0_124 = arith.constant 0 : index
    %c3_125 = arith.constant 3 : index
    %c0_126 = arith.constant 0 : index
    %c0_127 = arith.constant 0 : index
    %382 = vector.load %arg6[%c0_124, %c3_125, %c0_126, %c0_127] : memref<1x4x8x128xf32, #tpu.memory_space<vmem>>, vector<1x1x8x128xf32>
    %383 = vector.shape_cast %382 : vector<1x1x8x128xf32> to vector<8x128xf32>
    %384 = vector.shape_cast %381 : vector<8x128xf32> to vector<1x1x8x128xf32>
    tpu.vector_store %arg6[%c0_124, %c3_125, %c0_126, %c0_127], %384 {strides = array<i32>} : memref<1x4x8x128xf32, #tpu.memory_space<vmem>>, vector<1x1x8x128xf32>,
    return
  }
  func.func @transform_0(%arg0: i32, %arg1: i32) -> (i32, i32, i32) {
    %c1_i32 = arith.constant 1 : i32
    %0 = arith.muli %arg0, %c1_i32 : i32
    %1 = arith.addi %0, %arg1 : i32
    %c0_i32 = arith.constant 0 : i32
    %c0_i32_0 = arith.constant 0 : i32
    %c0_i32_1 = arith.constant 0 : i32
    return %c0_i32, %1, %c0_i32_0 : i32, i32, i32
  }
  func.func @transform_1(%arg0: i32, %arg1: i32) -> (i32, i32, i32) {
    %c1_i32 = arith.constant 1 : i32
    %0 = arith.muli %arg0, %c1_i32 : i32
    %1 = arith.addi %0, %arg1 : i32
    %c0_i32 = arith.constant 0 : i32
    %c0_i32_0 = arith.constant 0 : i32
    %c0_i32_1 = arith.constant 0 : i32
    return %c0_i32, %1, %c0_i32_0 : i32, i32, i32
  }
  func.func @transform_2(%arg0: i32, %arg1: i32) -> (i32, i32, i32) {
    %c1_i32 = arith.constant 1 : i32
    %0 = arith.muli %arg0, %c1_i32 : i32
    %1 = arith.addi %0, %arg1 : i32
    %c0_i32 = arith.constant 0 : i32
    %c0_i32_0 = arith.constant 0 : i32
    %c0_i32_1 = arith.constant 0 : i32
    return %c0_i32, %1, %c0_i32_0 : i32, i32, i32
  }
  func.func @transform_3(%arg0: i32, %arg1: i32) -> (i32, i32, i32) {
    %c1_i32 = arith.constant 1 : i32
    %0 = arith.muli %arg0, %c1_i32 : i32
    %1 = arith.addi %0, %arg1 : i32
    %c0_i32 = arith.constant 0 : i32
    %c0_i32_0 = arith.constant 0 : i32
    %c0_i32_1 = arith.constant 0 : i32
    return %c0_i32, %1, %c0_i32_0 : i32, i32, i32
  }
  func.func @transform_4(%arg0: i32, %arg1: i32) -> (i32, i32, i32, i32) {
    %c0_i32 = arith.constant 0 : i32
    %c0_i32_0 = arith.constant 0 : i32
    %c0_i32_1 = arith.constant 0 : i32
    %c0_i32_2 = arith.constant 0 : i32
    return %arg0, %c0_i32, %c0_i32_0, %c0_i32_1 : i32, i32, i32, i32
  }
}

</mosaic_0001>

<llo_original>
// kernel: tpu_custom_call.1
$region0: #{tpu_custom_call.1}
  #allocation0 [shape = 'u32[]', space=smem, size = 0x4, offset = 0x4, fixed_abs, tag = 'smem constant byte address 0x4 - core index']
  #allocation1 [shape = 'u32[72,128]{1,0:T(1,128)}', space=vmem, size = 0x9000, scoped, tag = 'internal scratch']
  %s0 = inlined_call_operand.hbm [shape: f32[30,16,128], index: 0, kind: input, shape index: {}]
  %s1 = inlined_call_operand.hbm [shape: f32[4,16,128], index: 1, kind: input, shape index: {}]
  %s2 = inlined_call_operand.hbm [shape: f32[20,16,128], index: 2, kind: input, shape index: {}]
  %s3 = inlined_call_operand.hbm [shape: f32[1,16,128], index: 3, kind: input, shape index: {}]
  %s4 = inlined_call_operand.hbm [shape: f32[2,4,8,128], index: 4, kind: output, shape index: {}]
  %s5 = sld [smem:[#allocation0]]
  $region69: #{tpu_custom_call.1} parent=0
    _
  %s7 = ssub.s32 1, %s5
  %s8 = scalar_select 0, %s7, %s5
  $region1: #{tpu_custom_call.1} parent=0
    #allocation2 [shape = 'u8[245760]{0}', space=vmem, size = 0x3c000, scoped, tag = 'input window, operand 0']
    #allocation3 [shape = 's32[2]{0}', space=sflag, size = 0x8, scoped, tag = 'scoped memory for tpu_custom_call.1']
    #allocation4 [shape = 's32[2]{0}', space=sflag, size = 0x8, scoped, tag = 'scoped memory for tpu_custom_call.1']
    #allocation5 [shape = 'u8[32768]{0}', space=vmem, size = 0x8000, scoped, tag = 'input window, operand 1']
    #allocation6 [shape = 's32[2]{0}', space=sflag, size = 0x8, scoped, tag = 'scoped memory for tpu_custom_call.1']
    #allocation7 [shape = 'u8[163840]{0}', space=vmem, size = 0x28000, scoped, tag = 'input window, operand 2']
    #allocation8 [shape = 'u8[8192]{0}', space=vmem, size = 0x2000, scoped, tag = 'input window, operand 3']
    #allocation9 [shape = 's32[2]{0}', space=sflag, size = 0x8, scoped, tag = 'scoped memory for tpu_custom_call.1']
    #allocation10 [shape = 'u8[32768]{0}', space=vmem, size = 0x8000, scoped, tag = 'output window, operand 0']
    %9 = vsyncpa [#allocation3], 0
    %s10 = scalar_lea.sflag [#allocation3], 1
    %11 = vsyncpa %s10, 0
    %12 = vsyncpa [#allocation6], 0
    %s13 = scalar_lea.sflag [#allocation6], 1
    %14 = vsyncpa %s13, 0
    %15 = vsyncpa [#allocation9], 0
    %s16 = scalar_lea.sflag [#allocation9], 1
    %17 = vsyncpa %s16, 0
    %18 = vsyncpa [#allocation4], 0
    %s19 = scalar_lea.sflag [#allocation4], 1
    %20 = vsyncpa %s19, 0
    loop: start=0, step=1, limit=4
    $region2: #{tpu_custom_call.1} parent=1 // loop_pre_header
      _
    $region3: #{tpu_custom_call.1} parent=1 // loop_header
      %s22 = sphi 0, %s26
      %p23 = scmp.ge.s32.totalorder %s22, 4
      %s29 = sphi 0, %s41
      %s30 = sphi 0, %s37
      %s31 = sphi 0, %s29
      %s32 = sphi 0, %s30
      %s33 = sphi 0, %s31
      %s34 = sphi 0, %s32
      %s46 = sphi 0, %s48
      %s49 = sphi 0, %s46
      %s50 = sphi 0, %s49
      %s66 = sphi 0, %s50
      %s74 = sphi 0, %s76
      %s77 = sphi 0, %s74
      %s78 = sphi 0, %s77
      %s94 = sphi 0, %s78
      %s102 = sphi 0, %s104
      %s105 = sphi 0, %s102
      %s106 = sphi 0, %s105
      %s122 = sphi 0, %s106
      %s130 = sphi 0, %s132
      %s133 = sphi 0, %s130
      %s134 = sphi 0, %s133
      %s150 = sphi 0, %s134
      %s156 = sphi 0, %s158
      %s159 = sphi 0, %s156
      %s160 = sphi 0, %s159
      %s176 = sphi 0, %s160
    $region4: #{tpu_custom_call.1} parent=1 // loop_header_branch
      %25 = sbr.rel (%p23) target = $region8
    $region5: #{tpu_custom_call.1} parent=1 // loop_body
      %s27 = ssub.s32 %s22, 1
      %s28 = ssub.s32 %s22, 2
      %s35 = sadd.s32 1, %s30
      %p36 = scmp.ge.s32.totalorder %s35, 1
      %s37 = scalar_select %p36, 0, %s35
      %s38 = sadd.s32 1, %s29
      %s39 = scalar_select %p36, %s38, %s29
      %p40 = scmp.ge.s32.totalorder %s39, 2
      %s41 = scalar_select %p40, 0, %s39
      %s42 = sadd.s32 %s29, %s30
      %s43 = sadd.s32 %s41, %s37
      %s44 = ssub.s32 %s42, %s43
      %p45 = scmp.eq.s32.totalorder %s44, 0
      %s47 = sadd.s32 %s46, 1
      %s48 = scalar_select %p45, %s46, %s47
      %p51 = pneg %p45
      %p52 = scmp.eq.s32.totalorder %s22, 1
      %p53 = por %p51, %p52
      %p54 = scmp.ne.s32.totalorder %s46, %s49
      %p55 = scmp.eq.s32.totalorder %s22, 0
      %p56 = por %p54, %p55
      %p57 = scmp.ne.s32.totalorder %s46, %s49
      %p58 = scmp.eq.s32.totalorder %s27, 1
      %p59 = por %p57, %p58
      %p60 = scmp.ne.s32.totalorder %s49, %s50
      %p61 = scmp.eq.s32.totalorder %s27, 0
      %p62 = por %p60, %p61
      %p63 = scmp.ne.s32.totalorder %s49, %s50
      %p64 = scmp.eq.s32.totalorder %s28, 1
      %p65 = por %p63, %p64
      %p67 = scmp.ne.s32.totalorder %s50, %s66
      %p68 = scmp.eq.s32.totalorder %s28, 0
      %p69 = por %p67, %p68
      %s70 = sadd.s32 %s29, %s30
      %s71 = sadd.s32 %s41, %s37
      %s72 = ssub.s32 %s70, %s71
      %p73 = scmp.eq.s32.totalorder %s72, 0
      %s75 = sadd.s32 %s74, 1
      %s76 = scalar_select %p73, %s74, %s75
      %p79 = pneg %p73
      %p80 = scmp.eq.s32.totalorder %s22, 1
      %p81 = por %p79, %p80
      %p82 = scmp.ne.s32.totalorder %s74, %s77
      %p83 = scmp.eq.s32.totalorder %s22, 0
      %p84 = por %p82, %p83
      %p85 = scmp.ne.s32.totalorder %s74, %s77
      %p86 = scmp.eq.s32.totalorder %s27, 1
      %p87 = por %p85, %p86
      %p88 = scmp.ne.s32.totalorder %s77, %s78
      %p89 = scmp.eq.s32.totalorder %s27, 0
      %p90 = por %p88, %p89
      %p91 = scmp.ne.s32.totalorder %s77, %s78
      %p92 = scmp.eq.s32.totalorder %s28, 1
      %p93 = por %p91, %p92
      %p95 = scmp.ne.s32.totalorder %s78, %s94
      %p96 = scmp.eq.s32.totalorder %s28, 0
      %p97 = por %p95, %p96
      %s98 = sadd.s32 %s29, %s30
      %s99 = sadd.s32 %s41, %s37
      %s100 = ssub.s32 %s98, %s99
      %p101 = scmp.eq.s32.totalorder %s100, 0
      %s103 = sadd.s32 %s102, 1
      %s104 = scalar_select %p101, %s102, %s103
      %p107 = pneg %p101
      %p108 = scmp.eq.s32.totalorder %s22, 1
      %p109 = por %p107, %p108
      %p110 = scmp.ne.s32.totalorder %s102, %s105
      %p111 = scmp.eq.s32.totalorder %s22, 0
      %p112 = por %p110, %p111
      %p113 = scmp.ne.s32.totalorder %s102, %s105
      %p114 = scmp.eq.s32.totalorder %s27, 1
      %p115 = por %p113, %p114
      %p116 = scmp.ne.s32.totalorder %s105, %s106
      %p117 = scmp.eq.s32.totalorder %s27, 0
      %p118 = por %p116, %p117
      %p119 = scmp.ne.s32.totalorder %s105, %s106
      %p120 = scmp.eq.s32.totalorder %s28, 1
      %p121 = por %p119, %p120
      %p123 = scmp.ne.s32.totalorder %s106, %s122
      %p124 = scmp.eq.s32.totalorder %s28, 0
      %p125 = por %p123, %p124
      %s126 = sadd.s32 %s29, %s30
      %s127 = sadd.s32 %s41, %s37
      %s128 = ssub.s32 %s126, %s127
      %p129 = scmp.eq.s32.totalorder %s128, 0
      %s131 = sadd.s32 %s130, 1
      %s132 = scalar_select %p129, %s130, %s131
      %p135 = pneg %p129
      %p136 = scmp.eq.s32.totalorder %s22, 1
      %p137 = por %p135, %p136
      %p138 = scmp.ne.s32.totalorder %s130, %s133
      %p139 = scmp.eq.s32.totalorder %s22, 0
      %p140 = por %p138, %p139
      %p141 = scmp.ne.s32.totalorder %s130, %s133
      %p142 = scmp.eq.s32.totalorder %s27, 1
      %p143 = por %p141, %p142
      %p144 = scmp.ne.s32.totalorder %s133, %s134
      %p145 = scmp.eq.s32.totalorder %s27, 0
      %p146 = por %p144, %p145
      %p147 = scmp.ne.s32.totalorder %s133, %s134
      %p148 = scmp.eq.s32.totalorder %s28, 1
      %p149 = por %p147, %p148
      %p151 = scmp.ne.s32.totalorder %s134, %s150
      %p152 = scmp.eq.s32.totalorder %s28, 0
      %p153 = por %p151, %p152
      %s154 = ssub.s32 %s29, %s41
      %p155 = scmp.eq.s32.totalorder %s154, 0
      %s157 = sadd.s32 %s156, 1
      %s158 = scalar_select %p155, %s156, %s157
      %p161 = pneg %p155
      %p162 = scmp.eq.s32.totalorder %s22, 1
      %p163 = por %p161, %p162
      %p164 = scmp.ne.s32.totalorder %s156, %s159
      %p165 = scmp.eq.s32.totalorder %s22, 0
      %p166 = por %p164, %p165
      %p167 = scmp.ne.s32.totalorder %s156, %s159
      %p168 = scmp.eq.s32.totalorder %s27, 1
      %p169 = por %p167, %p168
      %p170 = scmp.ne.s32.totalorder %s159, %s160
      %p171 = scmp.eq.s32.totalorder %s27, 0
      %p172 = por %p170, %p171
      %p173 = scmp.ne.s32.totalorder %s159, %s160
      %p174 = scmp.eq.s32.totalorder %s28, 1
      %p175 = por %p173, %p174
      %p177 = scmp.ne.s32.totalorder %s160, %s176
      %p178 = scmp.eq.s32.totalorder %s28, 0
      %p179 = por %p177, %p178
      %p180 = scmp.le.s32.totalorder 1, %s22
      %p181 = scmp.lt.s32.totalorder %s22, 3
      %p182 = pnand %p180, %p181
      %p183 = pneg %p182
      // Predicated region
      $region9: #{tpu_custom_call.1} parent=5 // pred_check
        _
      $region10: #{tpu_custom_call.1} parent=5 // pred_check_branch
        %185 = sbr.rel (%p182) target = $region12
      $region11: #{tpu_custom_call.1} parent=5 // pred_region
        %s186 = ssub.s32 %s22, 1
      $region12: #{tpu_custom_call.1} parent=5 // pred_fallthru
        _
      %p187 = scmp.lt.s32.totalorder %s22, 2
      // Predicated region
      $region13: #{tpu_custom_call.1} parent=5 // pred_check
        %p188 = pneg %p187
      $region14: #{tpu_custom_call.1} parent=5 // pred_check_branch
        %190 = sbr.rel (%p188) target = $region16
      $region15: #{tpu_custom_call.1} parent=5 // pred_region
        // Predicated region
        $region17: #{tpu_custom_call.1} parent=15 // pred_check
          %p191 = pneg %p56
        $region18: #{tpu_custom_call.1} parent=15 // pred_check_branch
          %193 = sbr.rel (%p191) target = $region20
        $region19: #{tpu_custom_call.1} parent=15 // pred_region
          %s194 = sand.u32 %s46, 1
          %s195 = scalar_lea.sflag [#allocation3], %s194
          %s196 = sand.u32 %s46, 1
          %s197 = smul.addr %s196, 240
          %s198 = scalar_lea.vmem [#allocation2], %s197
          %s199 = sadd.s32 %s29, %s30
          %201 = vsyncadd %s195, 0
          %s202 = smul.addr %s199, 8
          %s203 = scalar_lea.hbm %s0, %s202
          %s204 = sshll.u32 %s203, 4
          %s205 = int_to_ptr.hbm [resolvable:$true] %s204
          %s206 = sshll.u32 %s198, 4
          %s207 = int_to_ptr.vmem [resolvable:$true] %s206
          %212 = dma.hbm_to_vmem [thread:$0]  %s205, 3840, %s207, %s195, 256, 128, 8
        $region20: #{tpu_custom_call.1} parent=15 // pred_fallthru
          _
        // Predicated region
        $region21: #{tpu_custom_call.1} parent=15 // pred_check
          %p213 = pneg %p84
        $region22: #{tpu_custom_call.1} parent=15 // pred_check_branch
          %215 = sbr.rel (%p213) target = $region24
        $region23: #{tpu_custom_call.1} parent=15 // pred_region
          %s216 = sand.u32 %s22, 1
          %s217 = scalar_lea.sflag [#allocation6], %s216
          %s218 = sand.u32 %s74, 1
          %s219 = smul.addr %s218, 32
          %s220 = scalar_lea.vmem [#allocation5], %s219
          %s221 = sadd.s32 %s29, %s30
          %223 = vsyncadd %s217, 0
          %s224 = smul.addr %s221, 8
          %s225 = scalar_lea.hbm %s1, %s224
          %s226 = sshll.u32 %s225, 4
          %s227 = int_to_ptr.hbm [resolvable:$true] %s226
          %s228 = sshll.u32 %s220, 4
          %s229 = int_to_ptr.vmem [resolvable:$true] %s228
          %234 = dma.hbm_to_vmem [thread:$0]  %s227, 512, %s229, %s217, 256, 128, 8
        $region24: #{tpu_custom_call.1} parent=15 // pred_fallthru
          _
        // Predicated region
        $region25: #{tpu_custom_call.1} parent=15 // pred_check
          %p235 = pneg %p112
        $region26: #{tpu_custom_call.1} parent=15 // pred_check_branch
          %237 = sbr.rel (%p235) target = $region28
        $region27: #{tpu_custom_call.1} parent=15 // pred_region
          %s238 = sand.u32 %s22, 1
          %s239 = scalar_lea.sflag [#allocation6], %s238
          %s240 = sand.u32 %s102, 1
          %s241 = smul.addr %s240, 160
          %s242 = scalar_lea.vmem [#allocation7], %s241
          %s243 = sadd.s32 %s29, %s30
          %245 = vsyncadd %s239, 0
          %s246 = smul.addr %s243, 8
          %s247 = scalar_lea.hbm %s2, %s246
          %s248 = sshll.u32 %s247, 4
          %s249 = int_to_ptr.hbm [resolvable:$true] %s248
          %s250 = sshll.u32 %s242, 4
          %s251 = int_to_ptr.vmem [resolvable:$true] %s250
          %256 = dma.hbm_to_vmem [thread:$0]  %s249, 2560, %s251, %s239, 256, 128, 8
        $region28: #{tpu_custom_call.1} parent=15 // pred_fallthru
          _
        // Predicated region
        $region29: #{tpu_custom_call.1} parent=15 // pred_check
          %p257 = pneg %p140
        $region30: #{tpu_custom_call.1} parent=15 // pred_check_branch
          %259 = sbr.rel (%p257) target = $region32
        $region31: #{tpu_custom_call.1} parent=15 // pred_region
          %s260 = sand.u32 %s130, 1
          %s261 = scalar_lea.sflag [#allocation9], %s260
          %s262 = sand.u32 %s130, 1
          %s263 = smul.addr %s262, 8
          %s264 = scalar_lea.vmem [#allocation8], %s263
          %s265 = sadd.s32 %s29, %s30
          %267 = vsyncadd %s261, 0
          %s268 = smul.addr %s265, 8
          %s269 = scalar_lea.hbm %s3, %s268
          %s271 = sshll.u32 %s269, 4
          %s272 = int_to_ptr.hbm [resolvable:$true] %s271
          %s273 = sshll.u32 %s264, 4
          %s274 = int_to_ptr.vmem [resolvable:$true] %s273
          %276 = dma.hbm_to_vmem [thread:$0]  %s272, 128, %s274, %s261
        $region32: #{tpu_custom_call.1} parent=15 // pred_fallthru
          _
      $region16: #{tpu_custom_call.1} parent=5 // pred_fallthru
        _
      %p277 = scmp.le.s32.totalorder 1, %s22
      %p278 = scmp.lt.s32.totalorder %s22, 3
      %p279 = pnand %p277, %p278
      %p280 = pneg %p279
      // Predicated region
      $region33: #{tpu_custom_call.1} parent=5 // pred_check
        _
      $region34: #{tpu_custom_call.1} parent=5 // pred_check_branch
        %282 = sbr.rel (%p279) target = $region36
      $region35: #{tpu_custom_call.1} parent=5 // pred_region
        %s283 = ssub.s32 %s22, 1
        %s284 = sand.u32 %s49, 1
        %s285 = scalar_lea.sflag [#allocation3], %s284
        %s286 = sand.u32 %s49, 1
        %s287 = smul.addr %s286, 240
        %s288 = scalar_lea.vmem [#allocation2], %s287
        // Predicated region
        $region37: #{tpu_custom_call.1} parent=35 // pred_check
          %p289 = pneg %p62
        $region38: #{tpu_custom_call.1} parent=35 // pred_check_branch
          %291 = sbr.rel (%p289) target = $region40
        $region39: #{tpu_custom_call.1} parent=35 // pred_region
          %293 = dma.done %s285, 3840
        $region40: #{tpu_custom_call.1} parent=35 // pred_fallthru
          _
        %s294 = sand.u32 %s27, 1
        %s295 = scalar_lea.sflag [#allocation6], %s294
        %s296 = sand.u32 %s77, 1
        %s297 = smul.addr %s296, 32
        %s298 = scalar_lea.vmem [#allocation5], %s297
        // Predicated region
        $region41: #{tpu_custom_call.1} parent=35 // pred_check
          %p299 = pneg %p90
        $region42: #{tpu_custom_call.1} parent=35 // pred_check_branch
          %301 = sbr.rel (%p299) target = $region44
        $region43: #{tpu_custom_call.1} parent=35 // pred_region
          %303 = dma.done %s295, 512
        $region44: #{tpu_custom_call.1} parent=35 // pred_fallthru
          _
        %s304 = sand.u32 %s27, 1
        %s305 = scalar_lea.sflag [#allocation6], %s304
        %s306 = sand.u32 %s105, 1
        %s307 = smul.addr %s306, 160
        %s308 = scalar_lea.vmem [#allocation7], %s307
        // Predicated region
        $region45: #{tpu_custom_call.1} parent=35 // pred_check
          %p309 = pneg %p118
        $region46: #{tpu_custom_call.1} parent=35 // pred_check_branch
          %311 = sbr.rel (%p309) target = $region48
        $region47: #{tpu_custom_call.1} parent=35 // pred_region
          %313 = dma.done %s305, 2560
        $region48: #{tpu_custom_call.1} parent=35 // pred_fallthru
          _
        %s314 = sand.u32 %s133, 1
        %s315 = scalar_lea.sflag [#allocation9], %s314
        %s316 = sand.u32 %s133, 1
        %s317 = smul.addr %s316, 8
        %s318 = scalar_lea.vmem [#allocation8], %s317
        // Predicated region
        $region49: #{tpu_custom_call.1} parent=35 // pred_check
          %p319 = pneg %p146
        $region50: #{tpu_custom_call.1} parent=35 // pred_check_branch
          %321 = sbr.rel (%p319) target = $region52
        $region51: #{tpu_custom_call.1} parent=35 // pred_region
          %323 = dma.done %s315, 128
        $region52: #{tpu_custom_call.1} parent=35 // pred_fallthru
          _
        %s324 = sand.u32 %s49, 1
        %s325 = scalar_lea.sflag [#allocation3], %s324
        %s326 = sand.u32 %s49, 1
        %s327 = smul.addr %s326, 240
        %s328 = scalar_lea.vmem [#allocation2], %s327
        %p329 = pneg %p62
        %p330 = pneg %p59
        %s331 = sand.u32 %s27, 1
        %s332 = scalar_lea.sflag [#allocation6], %s331
        %s333 = sand.u32 %s77, 1
        %s334 = smul.addr %s333, 32
        %s335 = scalar_lea.vmem [#allocation5], %s334
        %p336 = pneg %p90
        %p337 = pneg %p87
        %s338 = sand.u32 %s27, 1
        %s339 = scalar_lea.sflag [#allocation6], %s338
        %s340 = sand.u32 %s105, 1
        %s341 = smul.addr %s340, 160
        %s342 = scalar_lea.vmem [#allocation7], %s341
        %p343 = pneg %p118
        %p344 = pneg %p115
        %s345 = sand.u32 %s133, 1
        %s346 = scalar_lea.sflag [#allocation9], %s345
        %s347 = sand.u32 %s133, 1
        %s348 = smul.addr %s347, 8
        %s349 = scalar_lea.vmem [#allocation8], %s348
        %p350 = pneg %p146
        %p351 = pneg %p143
        %p352 = pneg %p172
        %p353 = pneg %p169
        %s354 = sand.u32 %s159, 1
        %s355 = scalar_lea.sflag [#allocation4], %s354
        %s356 = sand.u32 %s159, 1
        %s357 = smul.addr %s356, 32
        %s358 = scalar_lea.vmem [#allocation10], %s357
        %s359 = sadd.s32 %s31, %s32
        %s360 = sadd.s32 %s31, %s32
        %s361 = sadd.s32 %s31, %s32
        %s362 = sadd.s32 %s31, %s32
        %p363 = scmp.eq.s32.totalorder %s32, 0
        // Predicated region
        $region53: #{tpu_custom_call.1} parent=35 // pred_check
          %p364 = pneg %p363
        $region54: #{tpu_custom_call.1} parent=35 // pred_check_branch
          %366 = sbr.rel (%p364) target = $region56
        $region55: #{tpu_custom_call.1} parent=35 // pred_region
          %367 = vst [vmem:[%s358] sm:$0xff] 0.0
          %368 = vst [vmem:[%s358 + $0x8] sm:$0xff] 0.0
          %369 = vst [vmem:[%s358 + $0x10] sm:$0xff] 0.0
          %370 = vst [vmem:[%s358 + $0x18] sm:$0xff] 0.0
        $region56: #{tpu_custom_call.1} parent=35 // pred_fallthru
          _
        %v371 = vld [vmem:[%s318] sm:$0xff]
        %v372 = vsub.f32 1.0, %v371
        %s373 = sadd.s32 0, 80
        %s374 = scalar_lea.vmem %s288, %s373 [#allocation2]
        %v375 = vld [vmem:[%s374] sm:$0xff]
        %v376 = vld [vmem:[%s308] sm:$0xff]
        %v377 = vsub.f32 %v375, %v376
        %v378 = vmul.f32 %v377, %v377
        %v379 = vadd.f32 %v378, 0.0
        %s380 = sadd.s32 0, 88
        %s381 = scalar_lea.vmem %s288, %s380 [#allocation2]
        %v382 = vld [vmem:[%s381] sm:$0xff]
        %s383 = sadd.s32 0, 8
        %s384 = scalar_lea.vmem %s308, %s383 [#allocation7]
        %v385 = vld [vmem:[%s384] sm:$0xff]
        %v386 = vsub.f32 %v382, %v385
        %v387 = vmul.f32 %v386, %v386
        %v388 = vadd.f32 %v379, %v387
        %s389 = sadd.s32 0, 96
        %s390 = scalar_lea.vmem %s288, %s389 [#allocation2]
        %v391 = vld [vmem:[%s390] sm:$0xff]
        %s392 = sadd.s32 0, 16
        %s393 = scalar_lea.vmem %s308, %s392 [#allocation7]
        %v394 = vld [vmem:[%s393] sm:$0xff]
        %v395 = vsub.f32 %v391, %v394
        %v396 = vmul.f32 %v395, %v395
        %v397 = vadd.f32 %v388, %v396
        %s398 = sadd.s32 0, 104
        %s399 = scalar_lea.vmem %s288, %s398 [#allocation2]
        %v400 = vld [vmem:[%s399] sm:$0xff]
        %s401 = sadd.s32 0, 24
        %s402 = scalar_lea.vmem %s308, %s401 [#allocation7]
        %v403 = vld [vmem:[%s402] sm:$0xff]
        %v404 = vsub.f32 %v400, %v403
        %v405 = vmul.f32 %v404, %v404
        %v406 = vadd.f32 %v397, %v405
        %s407 = sadd.s32 0, 112
        %s408 = scalar_lea.vmem %s288, %s407 [#allocation2]
        %v409 = vld [vmem:[%s408] sm:$0xff]
        %s410 = sadd.s32 0, 32
        %s411 = scalar_lea.vmem %s308, %s410 [#allocation7]
        %v412 = vld [vmem:[%s411] sm:$0xff]
        %v413 = vsub.f32 %v409, %v412
        %v414 = vmul.f32 %v413, %v413
        %v415 = vadd.f32 %v406, %v414
        %s416 = sadd.s32 0, 120
        %s417 = scalar_lea.vmem %s288, %s416 [#allocation2]
        %v418 = vld [vmem:[%s417] sm:$0xff]
        %s419 = sadd.s32 0, 40
        %s420 = scalar_lea.vmem %s308, %s419 [#allocation7]
        %v421 = vld [vmem:[%s420] sm:$0xff]
        %v422 = vsub.f32 %v418, %v421
        %v423 = vmul.f32 %v422, %v422
        %v424 = vadd.f32 %v415, %v423
        %s425 = sadd.s32 0, 128
        %s426 = scalar_lea.vmem %s288, %s425 [#allocation2]
        %v427 = vld [vmem:[%s426] sm:$0xff]
        %s428 = sadd.s32 0, 48
        %s429 = scalar_lea.vmem %s308, %s428 [#allocation7]
        %v430 = vld [vmem:[%s429] sm:$0xff]
        %v431 = vsub.f32 %v427, %v430
        %v432 = vmul.f32 %v431, %v431
        %v433 = vadd.f32 %v424, %v432
        %s434 = sadd.s32 0, 136
        %s435 = scalar_lea.vmem %s288, %s434 [#allocation2]
        %v436 = vld [vmem:[%s435] sm:$0xff]
        %s437 = sadd.s32 0, 56
        %s438 = scalar_lea.vmem %s308, %s437 [#allocation7]
        %v439 = vld [vmem:[%s438] sm:$0xff]
        %v440 = vsub.f32 %v436, %v439
        %v441 = vmul.f32 %v440, %v440
        %v442 = vadd.f32 %v433, %v441
        %s443 = sadd.s32 0, 144
        %s444 = scalar_lea.vmem %s288, %s443 [#allocation2]
        %v445 = vld [vmem:[%s444] sm:$0xff]
        %s446 = sadd.s32 0, 64
        %s447 = scalar_lea.vmem %s308, %s446 [#allocation7]
        %v448 = vld [vmem:[%s447] sm:$0xff]
        %v449 = vsub.f32 %v445, %v448
        %v450 = vmul.f32 %v449, %v449
        %v451 = vadd.f32 %v442, %v450
        %s452 = sadd.s32 0, 152
        %s453 = scalar_lea.vmem %s288, %s452 [#allocation2]
        %v454 = vld [vmem:[%s453] sm:$0xff]
        %s455 = sadd.s32 0, 72
        %s456 = scalar_lea.vmem %s308, %s455 [#allocation7]
        %v457 = vld [vmem:[%s456] sm:$0xff]
        %v458 = vsub.f32 %v454, %v457
        %v459 = vmul.f32 %v458, %v458
        %v460 = vadd.f32 %v451, %v459
        %s461 = sadd.s32 0, 160
        %s462 = scalar_lea.vmem %s288, %s461 [#allocation2]
        %v463 = vld [vmem:[%s462] sm:$0xff]
        %s464 = scalar_lea.vmem %s308, %s373 [#allocation7]
        %v465 = vld [vmem:[%s464] sm:$0xff]
        %v466 = vsub.f32 %v463, %v465
        %v467 = vmul.f32 %v466, %v466
        %v468 = vadd.f32 %v460, %v467
        %s469 = sadd.s32 0, 168
        %s470 = scalar_lea.vmem %s288, %s469 [#allocation2]
        %v471 = vld [vmem:[%s470] sm:$0xff]
        %s472 = scalar_lea.vmem %s308, %s380 [#allocation7]
        %v473 = vld [vmem:[%s472] sm:$0xff]
        %v474 = vsub.f32 %v471, %v473
        %v475 = vmul.f32 %v474, %v474
        %v476 = vadd.f32 %v468, %v475
        %s477 = sadd.s32 0, 176
        %s478 = scalar_lea.vmem %s288, %s477 [#allocation2]
        %v479 = vld [vmem:[%s478] sm:$0xff]
        %s480 = scalar_lea.vmem %s308, %s389 [#allocation7]
        %v481 = vld [vmem:[%s480] sm:$0xff]
        %v482 = vsub.f32 %v479, %v481
        %v483 = vmul.f32 %v482, %v482
        %v484 = vadd.f32 %v476, %v483
        %s485 = sadd.s32 0, 184
        %s486 = scalar_lea.vmem %s288, %s485 [#allocation2]
        %v487 = vld [vmem:[%s486] sm:$0xff]
        %s488 = scalar_lea.vmem %s308, %s398 [#allocation7]
        %v489 = vld [vmem:[%s488] sm:$0xff]
        %v490 = vsub.f32 %v487, %v489
        %v491 = vmul.f32 %v490, %v490
        %v492 = vadd.f32 %v484, %v491
        %s493 = sadd.s32 0, 192
        %s494 = scalar_lea.vmem %s288, %s493 [#allocation2]
        %v495 = vld [vmem:[%s494] sm:$0xff]
        %s496 = scalar_lea.vmem %s308, %s407 [#allocation7]
        %v497 = vld [vmem:[%s496] sm:$0xff]
        %v498 = vsub.f32 %v495, %v497
        %v499 = vmul.f32 %v498, %v498
        %v500 = vadd.f32 %v492, %v499
        %s501 = sadd.s32 0, 200
        %s502 = scalar_lea.vmem %s288, %s501 [#allocation2]
        %v503 = vld [vmem:[%s502] sm:$0xff]
        %s504 = scalar_lea.vmem %s308, %s416 [#allocation7]
        %v505 = vld [vmem:[%s504] sm:$0xff]
        %v506 = vsub.f32 %v503, %v505
        %v507 = vmul.f32 %v506, %v506
        %v508 = vadd.f32 %v500, %v507
        %s509 = sadd.s32 0, 208
        %s510 = scalar_lea.vmem %s288, %s509 [#allocation2]
        %v511 = vld [vmem:[%s510] sm:$0xff]
        %s512 = scalar_lea.vmem %s308, %s425 [#allocation7]
        %v513 = vld [vmem:[%s512] sm:$0xff]
        %v514 = vsub.f32 %v511, %v513
        %v515 = vmul.f32 %v514, %v514
        %v516 = vadd.f32 %v508, %v515
        %s517 = sadd.s32 0, 216
        %s518 = scalar_lea.vmem %s288, %s517 [#allocation2]
        %v519 = vld [vmem:[%s518] sm:$0xff]
        %s520 = scalar_lea.vmem %s308, %s434 [#allocation7]
        %v521 = vld [vmem:[%s520] sm:$0xff]
        %v522 = vsub.f32 %v519, %v521
        %v523 = vmul.f32 %v522, %v522
        %v524 = vadd.f32 %v516, %v523
        %s525 = sadd.s32 0, 224
        %s526 = scalar_lea.vmem %s288, %s525 [#allocation2]
        %v527 = vld [vmem:[%s526] sm:$0xff]
        %s528 = scalar_lea.vmem %s308, %s443 [#allocation7]
        %v529 = vld [vmem:[%s528] sm:$0xff]
        %v530 = vsub.f32 %v527, %v529
        %v531 = vmul.f32 %v530, %v530
        %v532 = vadd.f32 %v524, %v531
        %s533 = sadd.s32 0, 232
        %s534 = scalar_lea.vmem %s288, %s533 [#allocation2]
        %v535 = vld [vmem:[%s534] sm:$0xff]
        %s536 = scalar_lea.vmem %s308, %s452 [#allocation7]
        %v537 = vld [vmem:[%s536] sm:$0xff]
        %v538 = vsub.f32 %v535, %v537
        %v539 = vmul.f32 %v538, %v538
        %v540 = vadd.f32 %v532, %v539
        %v541 = vmul.f32 %v371, %v540
        %v542 = vadd.f32 %v541, 0.0
        %v543 = vld [vmem:[%s298] sm:$0xff]
        %s544 = scalar_lea.vmem %s298, %s383 [#allocation5]
        %v545 = vld [vmem:[%s544] sm:$0xff]
        %s546 = scalar_lea.vmem %s298, %s392 [#allocation5]
        %v547 = vld [vmem:[%s546] sm:$0xff]
        %s548 = scalar_lea.vmem %s298, %s401 [#allocation5]
        %v549 = vld [vmem:[%s548] sm:$0xff]
        %v550 = vmul.f32 %v543, 0.25
        %v551 = vmul.f32 %v545, 0.25
        %v552 = vmul.f32 %v547, 0.5
        %v553 = vsub.f32 %v550, %v552
        %v554 = vadd.f32 %v550, %v552
        %v555 = vmul.f32 %v549, 0.5
        %v556 = vsub.f32 %v551, %v555
        %v557 = vadd.f32 %v551, %v555
        %v558 = vmul.f32 %v547, %v549
        %v559 = vld [vmem:[%s288] sm:$0xff]
        %s560 = scalar_lea.vmem %s288, %s383 [#allocation2]
        %v561 = vld [vmem:[%s560] sm:$0xff]
        %s562 = scalar_lea.vmem %s288, %s392 [#allocation2]
        %v563 = vld [vmem:[%s562] sm:$0xff]
        %s564 = scalar_lea.vmem %s288, %s401 [#allocation2]
        %v565 = vld [vmem:[%s564] sm:$0xff]
        %s566 = scalar_lea.vmem %s288, %s410 [#allocation2]
        %v567 = vld [vmem:[%s566] sm:$0xff]
        %v568 = vmul.f32 %v567, %v567
        %v569 = vadd.f32 %v568, 0.0
        %v570 = vmul.f32 %v559, 0.25
        %v571 = vmul.f32 %v561, 0.25
        %v572 = vmul.f32 %v563, 0.5
        %v573 = vsub.f32 %v570, %v572
        %v574 = vadd.f32 %v570, %v572
        %v575 = vmul.f32 %v565, 0.5
        %v576 = vsub.f32 %v571, %v575
        %v577 = vadd.f32 %v571, %v575
        %v578 = vmul.f32 %v563, %v565
        %v579 = vmin.f32 %v574, %v554
        %v580 = vmax.f32 %v573, %v553
        %v581 = vsub.f32 %v579, %v580
        %v582 = vmax.f32 %v581, 0.0
        %v583 = vmin.f32 %v577, %v557
        %v584 = vmax.f32 %v576, %v556
        %v585 = vsub.f32 %v583, %v584
        %v586 = vmax.f32 %v585, 0.0
        %v587 = vmul.f32 %v582, %v586
        %v588 = vadd.f32 %v578, %v558
        %v589 = vsub.f32 %v588, %v587
        %s590 = scalar_lea.vmem %s288, %s419 [#allocation2]
        %v591 = vld [vmem:[%s590] sm:$0xff]
        %s592 = scalar_lea.vmem %s288, %s428 [#allocation2]
        %v593 = vld [vmem:[%s592] sm:$0xff]
        %s594 = scalar_lea.vmem %s288, %s437 [#allocation2]
        %v595 = vld [vmem:[%s594] sm:$0xff]
        %s596 = scalar_lea.vmem %s288, %s446 [#allocation2]
        %v597 = vld [vmem:[%s596] sm:$0xff]
        %s598 = scalar_lea.vmem %s288, %s455 [#allocation2]
        %v599 = vld [vmem:[%s598] sm:$0xff]
        %v600 = vmul.f32 %v599, %v599
        %v601 = vadd.f32 %v569, %v600
        %v602 = vmul.f32 %v591, 0.25
        %v603 = vmul.f32 %v593, 0.25
        %v604 = vmul.f32 %v595, 0.5
        %v605 = vsub.f32 %v602, %v604
        %v606 = vadd.f32 %v602, %v604
        %v607 = vmul.f32 %v597, 0.5
        %v608 = vsub.f32 %v603, %v607
        %v609 = vadd.f32 %v603, %v607
        %v610 = vmul.f32 %v595, %v597
        %v611 = vmin.f32 %v606, %v554
        %v612 = vmax.f32 %v605, %v553
        %v613 = vsub.f32 %v611, %v612
        %v614 = vmax.f32 %v613, 0.0
        %v615 = vmin.f32 %v609, %v557
        %v616 = vmax.f32 %v608, %v556
        %v617 = vsub.f32 %v615, %v616
        %v618 = vmax.f32 %v617, 0.0
        %v619 = vmul.f32 %v614, %v618
        %v620 = vadd.f32 %v610, %v558
        %v621 = vsub.f32 %v620, %v619
        %v622 = vmul.f32 %v619, %v589
        %v623 = vmul.f32 %v587, %v621
        %vm624 = vcmp.gt.f32.partialorder %v622, %v623
        %v625 = vsel %vm624, %v619, %v587
        %v626 = vsel %vm624, %v621, %v589
        %v627 = vsel %vm624, %v591, %v559
        %v628 = vsel %vm624, %v593, %v561
        %v629 = vsel %vm624, %v595, %v563
        %v630 = vsel %vm624, %v597, %v565
        %v631 = vsel %vm624, %v599, %v567
        %v632 = vmul.f32 %v372, %v601
        %v633 = vadd.f32 %v632, 0.0
        %vm634 = vcmp.gt.f32.partialorder %v626, 0.0
        %v635 = vsel %vm634, %v625, 0.0
        %v636 = vsel %vm634, %v626, 1.0
        %v637 = vrcp.pop %v636
        %v638 = vmul.f32 %v636, %v637
        %v639 = vsub.f32 1.0, %v638
        %v640 = vmul.f32 %v637, %v639
        %v641 = vadd.f32 %v637, %v640
        %vm642 = vweird.f32 %v636
        %vm643 = vweird.f32 %v637
        %vm644 = vmor %vm642, %vm643
        %v645 = vsel %vm644, %v637, %v641
        %v646 = vand.u32 2147483647, %v636
        %vm647 = vcmp.eq.f32.partialorder %v646, 8.507059e+37
        %v648 = vand.u32 %v636, 2147483648
        %v649 = vor.u32 1.1754944e-38, %v648
        %v650 = vsel %vm647, %v649, %v645
        %v651 = vmul.f32 %v635, %v650
        %v652 = vsub.f32 %v631, %v651
        %v653 = vmul.f32 %v652, %v652
        %v654 = vmul.f32 %v371, %v653
        %v655 = vadd.f32 %v654, 0.0
        %v656 = vsub.f32 %v627, %v543
        %v657 = vmul.f32 %v656, %v656
        %v658 = vsub.f32 %v628, %v545
        %v659 = vmul.f32 %v658, %v658
        %v660 = vadd.f32 %v657, %v659
        %v661 = vrsqrt.pop %v629
        %v662 = vmul.f32 %v661, %v629
        %v663 = vmul.f32 %v662, %v661
        %v664 = vmul.f32 0.5, %v663
        %v665 = vsub.f32 1.5, %v664
        %v666 = vmul.f32 %v661, %v665
        %v667 = vmul.f32 %v629, %v666
        %vm668 = vcmp.eq.f32.partialorder %v629, inf
        %v669 = vsel %vm668, %v629, %v667
        %vm670 = vcmp.eq.f32.partialorder %v629, 0.0
        %v671 = vand.u32 %v629, 2147483648
        %v672 = vsel %vm670, %v671, %v669
        %v673 = vrsqrt.pop %v547
        %v674 = vmul.f32 %v673, %v547
        %v675 = vmul.f32 %v674, %v673
        %v676 = vmul.f32 0.5, %v675
        %v677 = vsub.f32 1.5, %v676
        %v678 = vmul.f32 %v673, %v677
        %v679 = vmul.f32 %v547, %v678
        %vm680 = vcmp.eq.f32.partialorder %v547, inf
        %v681 = vsel %vm680, %v547, %v679
        %vm682 = vcmp.eq.f32.partialorder %v547, 0.0
        %v683 = vand.u32 %v547, 2147483648
        %v684 = vsel %vm682, %v683, %v681
        %v685 = vsub.f32 %v672, %v684
        %v686 = vmul.f32 %v685, %v685
        %v687 = vrsqrt.pop %v630
        %v688 = vmul.f32 %v687, %v630
        %v689 = vmul.f32 %v688, %v687
        %v690 = vmul.f32 0.5, %v689
        %v691 = vsub.f32 1.5, %v690
        %v692 = vmul.f32 %v687, %v691
        %v693 = vmul.f32 %v630, %v692
        %vm694 = vcmp.eq.f32.partialorder %v630, inf
        %v695 = vsel %vm694, %v630, %v693
        %vm696 = vcmp.eq.f32.partialorder %v630, 0.0
        %v697 = vand.u32 %v630, 2147483648
        %v698 = vsel %vm696, %v697, %v695
        %v699 = vrsqrt.pop %v549
        %v700 = vmul.f32 %v699, %v549
        %v701 = vmul.f32 %v700, %v699
        %v702 = vmul.f32 0.5, %v701
        %v703 = vsub.f32 1.5, %v702
        %v704 = vmul.f32 %v699, %v703
        %v705 = vmul.f32 %v549, %v704
        %vm706 = vcmp.eq.f32.partialorder %v549, inf
        %v707 = vsel %vm706, %v549, %v705
        %vm708 = vcmp.eq.f32.partialorder %v549, 0.0
        %v709 = vand.u32 %v549, 2147483648
        %v710 = vsel %vm708, %v709, %v707
        %v711 = vsub.f32 %v698, %v710
        %v712 = vmul.f32 %v711, %v711
        %v713 = vadd.f32 %v686, %v712
        %vm714 = vcmp.gt.f32.partialorder %v371, 0.0
        %v715 = vadd.f32 %v660, %v713
        %v716 = vsel %vm714, %v715, 0.0
        %v717 = vadd.f32 %v716, 0.0
        %v718 = vld [vmem:[%s358] sm:$0xff]
        %v719 = vadd.f32 %v718, %v542
        %720 = vst [vmem:[%s358] sm:$0xff] %v719
        %s721 = scalar_lea.vmem %s358, 8 [#allocation10]
        %v722 = vld [vmem:[%s721] sm:$0xff]
        %v723 = vadd.f32 %v722, %v633
        %724 = vst [vmem:[%s721] sm:$0xff] %v723
        %s725 = scalar_lea.vmem %s358, 16 [#allocation10]
        %v726 = vld [vmem:[%s725] sm:$0xff]
        %v727 = vadd.f32 %v726, %v655
        %728 = vst [vmem:[%s725] sm:$0xff] %v727
        %s729 = scalar_lea.vmem %s358, 24 [#allocation10]
        %v730 = vld [vmem:[%s729] sm:$0xff]
        %v731 = vadd.f32 %v730, %v717
        %732 = vst [vmem:[%s729] sm:$0xff] %v731
        %s733 = sand.u32 %s159, 1
        %s734 = scalar_lea.sflag [#allocation4], %s733
        %s735 = sand.u32 %s159, 1
        %s736 = smul.addr %s735, 32
        %s737 = scalar_lea.vmem [#allocation10], %s736
        // Predicated region
        $region57: #{tpu_custom_call.1} parent=35 // pred_check
          %p738 = pneg %p169
        $region58: #{tpu_custom_call.1} parent=35 // pred_check_branch
          %740 = sbr.rel (%p738) target = $region60
        $region59: #{tpu_custom_call.1} parent=35 // pred_region
          %742 = vsyncadd %s734, 0
          %s743 = smul.addr %s31, 4
          %s744 = smul.addr %s743, 8
          %s745 = scalar_lea.hbm %s4, %s744
          %s746 = sshll.u32 %s737, 4
          %s747 = int_to_ptr.vmem [resolvable:$true] %s746
          %s748 = sshll.u32 %s745, 4
          %s749 = int_to_ptr.hbm [resolvable:$true] %s748
          %754 = dma.vmem_to_hbm [thread:$0]  %s747, 512, %s749, %s734, 128, 128, 8
        $region60: #{tpu_custom_call.1} parent=35 // pred_fallthru
          _
      $region36: #{tpu_custom_call.1} parent=5 // pred_fallthru
        _
      %p755 = scmp.le.s32.totalorder 2, %s22
      // Predicated region
      $region61: #{tpu_custom_call.1} parent=5 // pred_check
        %p756 = pneg %p755
      $region62: #{tpu_custom_call.1} parent=5 // pred_check_branch
        %758 = sbr.rel (%p756) target = $region64
      $region63: #{tpu_custom_call.1} parent=5 // pred_region
        %s759 = ssub.s32 %s22, 2
        // Predicated region
        $region65: #{tpu_custom_call.1} parent=63 // pred_check
          %p760 = pneg %p175
        $region66: #{tpu_custom_call.1} parent=63 // pred_check_branch
          %762 = sbr.rel (%p760) target = $region68
        $region67: #{tpu_custom_call.1} parent=63 // pred_region
          %s763 = sand.u32 %s160, 1
          %s764 = scalar_lea.sflag [#allocation4], %s763
          %s765 = sand.u32 %s160, 1
          %s766 = smul.addr %s765, 32
          %s767 = scalar_lea.vmem [#allocation10], %s766
          %769 = dma.done %s764, 512
        $region68: #{tpu_custom_call.1} parent=63 // pred_fallthru
          _
      $region64: #{tpu_custom_call.1} parent=5 // pred_fallthru
        _
    $region6: #{tpu_custom_call.1} parent=1 // loop_footer
      %s26 = sadd.s32 1, %s22
    $region7: #{tpu_custom_call.1} parent=1 // loop_footer_branch
      %21 = sbr.rel target = $region3
    $region8: #{tpu_custom_call.1} parent=1 // loop_exit
      _
    %770 = vsyncpa [#allocation3], 1
    %s771 = scalar_lea.sflag [#allocation3], 1
    %772 = vsyncpa %s771, 1
    %773 = vsyncpa [#allocation6], 1
    %s774 = scalar_lea.sflag [#allocation6], 1
    %775 = vsyncpa %s774, 1
    %776 = vsyncpa [#allocation9], 1
    %s777 = scalar_lea.sflag [#allocation9], 1
    %778 = vsyncpa %s777, 1
    %779 = vsyncpa [#allocation4], 1
    %s780 = scalar_lea.sflag [#allocation4], 1
    %781 = vsyncpa %s780, 1

</llo_original>
